<compile_context>
chip_gen: v5e
topology: v5e:2x2
jax: 0.10.0
libtpu: 0.0.40
codegen_flags: <defaults>
</compile_context>

<pallas_src>
import jax
import jax.numpy as jnp
from jax.experimental import pallas as pl
from jax.experimental.pallas import tpu as pltpu


def _rup(n, m):
    return ((n + m - 1) // m) * m


# ---------------------------------------------------------------------------
# Kernel: fused depthwise (kernel==stride, pad=0) conv + BN + ReLU6, one tile.
#   x_ref   : (1, tc, th, dr, W)  input rows (free reshape of native NCHW)
#   w_ref   : (tc, 1, dr, W)      per-channel row-tap weights, lane-periodic in
#                                 the column tap, BN scale folded in (f32)
#   b_ref   : (tc, 1, 1)          fused conv-bias + BN shift (f32)
#   sel_ref : (W, Wo)             0/1 column segment-sum selection matrix (f32)
#   o_ref   : (1, tc, th, Wo)     output tile, native NCHW layout
# ---------------------------------------------------------------------------
def conv_embed_kernel(x_ref, w_ref, b_ref, sel_ref, o_ref):
    tc, th, Wo = o_ref.shape[1], o_ref.shape[2], o_ref.shape[3]
    W = x_ref.shape[4]

    # Weighted row-tap reduction: VALU multiply + XLU sublane reduce.
    xw = x_ref[0].astype(jnp.float32) * w_ref[...]          # (tc, th, dr, W)
    acc = jnp.sum(xw, axis=2)                               # (tc, th, W)

    # Column-tap segmented sum on the (otherwise idle) MXU.
    red = jnp.dot(acc.reshape(tc * th, W), sel_ref[...],
                  preferred_element_type=jnp.float32)       # (tc*th, Wo)

    out = red.reshape(tc, th, Wo) + b_ref[...]              # fused bias / BN shift
    o_ref[0] = jnp.clip(out, 0.0, 6.0).astype(o_ref.dtype)  # ReLU6


# ---------------------------------------------------------------------------
# Padding-aware tile selection: (channels per block, output rows per block).
# Guarantees th % 8 == 0 or tc == 1 so every in-kernel reshape is layout-clean.
# ---------------------------------------------------------------------------
def _pick_tiles(B, C, Ho, Wo, dr, W, itemsize, budget_bytes=24 * 1024 * 1024):
    drp, Wp, Wop = _rup(dr, 8), _rup(W, 128), _rup(Wo, 128)

    def usage(tc, th):
        thp = _rup(th, 8)
        x_blk = 2 * tc * th * drp * Wp * itemsize     # double-buffered input
        xw_tmp = tc * th * drp * Wp * 4               # in-kernel f32 product
        acc_tmp = tc * thp * Wp * 4                   # in-kernel f32 row-reduced
        w_blk = 2 * tc * drp * Wp * 4
        b_blk = 2 * tc * 8 * 128 * 4                  # (tc,1,1) pads to (8,128)/chan
        o_blk = 2 * tc * thp * Wop * itemsize
        s_blk = 2 * _rup(W, 8) * Wop * 4
        return x_blk + xw_tmp + acc_tmp + w_blk + b_blk + o_blk + s_blk

    if Ho < 8:
        # Tiny output height: keep every reshape trivially layout-clean (tc=1).
        # Such shapes are small, so per-step overhead is irrelevant.
        return 1, Ho

    th = (Ho // 8) * 8
    tc = C
    while usage(tc, th) > budget_bytes and (tc > 1 or th > 8):
        if th > 8:
            th = max(8, (th // 2) // 8 * 8)
        elif tc > 1:
            tc = max(1, tc // 2)
        else:
            break

    # Ensure >=2 grid blocks so both TensorCores (v7x megacore) get work.
    if B * pl.cdiv(C, tc) * pl.cdiv(Ho, th) < 2:
        if C > 1:
            tc = max(1, (C + 1) // 2)
        elif Ho > 8:
            th = max(8, ((Ho + 1) // 2) // 8 * 8)
    return tc, th


# ---------------------------------------------------------------------------
# Wrapper: NCHW in / NCHW out (PyTorch convention), eval-mode BatchNorm.
# ---------------------------------------------------------------------------
def conv_channel_embedding(x, weight, bias, gamma, beta,
                           running_mean, running_var, down_ratio, eps=1e-5):
    B, C, H, W = x.shape
    dr = int(down_ratio)
    Ho, Wo = H // dr, W // dr

    # Conv with stride==kernel drops any remainder rows/cols (PyTorch semantics).
    if H != Ho * dr or W != Wo * dr:
        x = x[:, :, :Ho * dr, :Wo * dr]      # rare; only path that copies
        H, W = Ho * dr, Wo * dr

    # Free metadata reshape: (B, C, H, W) -> (B, C, Ho, dr, W).  No HBM copy.
    x5 = x.reshape(B, C, Ho, dr, W)

    # Fold conv bias + eval-mode BatchNorm into the weights / a single shift.
    scale = (gamma / jnp.sqrt(running_var + eps)).astype(jnp.float32)        # (C,)
    w_scaled = weight.reshape(C, dr, dr).astype(jnp.float32) * scale[:, None, None]
    # Lane-periodic column-tap weights: w_lane[c, i, w] = w_scaled[c, i, w % dr].
    w_lane = jnp.tile(w_scaled, (1, 1, Wo)).reshape(C, 1, dr, W)
    b_fused = ((bias - running_mean) * scale + beta).astype(jnp.float32)
    b_fused = b_fused.reshape(C, 1, 1)
    # 0/1 selection matrix doing the column-tap segmented sum on the MXU.
    sel = (jnp.arange(W)[:, None] // dr ==
           jnp.arange(Wo)[None, :]).astype(jnp.float32)                      # (W, Wo)

    tc, th = _pick_tiles(B, C, Ho, Wo, dr, W, x.dtype.itemsize)
    grid = (pl.cdiv(C, tc), B, pl.cdiv(Ho, th))

    out = pl.pallas_call(
        conv_embed_kernel,
        grid=grid,
        in_specs=[
            pl.BlockSpec((1, tc, th, dr, W), lambda c, b, h: (b, c, h, 0, 0)),
            pl.BlockSpec((tc, 1, dr, W), lambda c, b, h: (c, 0, 0, 0)),
            pl.BlockSpec((tc, 1, 1), lambda c, b, h: (c, 0, 0)),
            pl.BlockSpec((W, Wo), lambda c, b, h: (0, 0)),
        ],
        out_specs=pl.BlockSpec((1, tc, th, Wo), lambda c, b, h: (b, c, h, 0)),
        out_shape=jax.ShapeDtypeStruct((B, C, Ho, Wo), x.dtype),
        compiler_params=pltpu.CompilerParams(
            dimension_semantics=("parallel", "parallel", "parallel"),
            vmem_limit_bytes=64 * 1024 * 1024,
        ),
    )(x5, w_lane, b_fused, sel)
    return out


# ---------------------------------------------------------------------------
# Pure-JAX reference (for correctness verification)
# ---------------------------------------------------------------------------
def reference(x, weight, bias, gamma, beta, running_mean, running_var,
              down_ratio, eps=1e-5):
    dr = int(down_ratio)
    y = jax.lax.conv_general_dilated(
        x, weight, window_strides=(dr, dr), padding="VALID",
        dimension_numbers=("NCHW", "OIHW", "NCHW"),
        feature_group_count=x.shape[1])
    y = y + bias.reshape(1, -1, 1, 1)
    y = ((y - running_mean.reshape(1, -1, 1, 1))
         / jnp.sqrt(running_var.reshape(1, -1, 1, 1) + eps)
         * gamma.reshape(1, -1, 1, 1) + beta.reshape(1, -1, 1, 1))
    return jnp.clip(y, 0.0, 6.0)


if __name__ == "__main__":
    def run_case(B, C, H, W, dr, seed):
        key = jax.random.PRNGKey(seed)
        kx, kw, kb, kg, kbe, km, kv = jax.random.split(key, 7)
        x = jax.random.normal(kx, (B, C, H, W), dtype=jnp.float32)
        weight = 0.1 * jax.random.normal(kw, (C, 1, dr, dr), dtype=jnp.float32)
        bias = 0.1 * jax.random.normal(kb, (C,), dtype=jnp.float32)
        gamma = 1.0 + 0.1 * jax.random.normal(kg, (C,), dtype=jnp.float32)
        beta = 0.1 * jax.random.normal(kbe, (C,), dtype=jnp.float32)
        running_mean = 0.1 * jax.random.normal(km, (C,), dtype=jnp.float32)
        running_var = 1.0 + jnp.abs(0.1 * jax.random.normal(kv, (C,), dtype=jnp.float32))

        out = conv_channel_embedding(x, weight, bias, gamma, beta,
                                     running_mean, running_var, dr)
        out = jax.block_until_ready(out)
        ref = jax.block_until_ready(
            reference(x, weight, bias, gamma, beta, running_mean, running_var, dr))

        assert out.shape == (B, C, H // dr, W // dr), out.shape
        assert bool(jnp.all(jnp.isfinite(out)))
        err = float(jnp.max(jnp.abs(out - ref)))
        assert bool(jnp.allclose(out, ref, atol=1e-4, rtol=1e-4)), err

    # Main (lane-dense, multi-channel-block) path.
    run_case(B=2, C=16, H=32, W=32, dr=4, seed=0)
    # Small-output path (Ho < 8 -> one channel per grid step, still fused).
    run_case(B=2, C=16, H=16, W=16, dr=4, seed=1)
    print("KERNEL_OK")
</pallas_src>

<mosaic_0001>
module attributes {stable_mosaic.version = 11 : i64} {
  func.func @conv_embed_kernel(%arg0: i32, %arg1: i32, %arg2: i32, %arg3: memref<1x16x8x4x32xf32, #tpu.memory_space<vmem>>, %arg4: memref<16x1x4x32xf32, #tpu.memory_space<vmem>>, %arg5: memref<16x1x1xf32, #tpu.memory_space<vmem>>, %arg6: memref<32x8xf32, #tpu.memory_space<vmem>>, %arg7: memref<1x16x8x8xf32, #tpu.memory_space<vmem>>) attributes {dimension_semantics = [#tpu.dimension_semantics<parallel>, #tpu.dimension_semantics<parallel>, #tpu.dimension_semantics<parallel>], iteration_bounds = array<i64: 1, 2, 1>, scalar_prefetch = 0 : i64, scratch_operands = 0 : i64, tpu.core_type = #tpu.core_type<tc>, window_params = [{transform_indices = @transform_0, window_bounds = array<i64: 1, 16, 8, 4, 32>}, {transform_indices = @transform_1, window_bounds = array<i64: 16, 1, 4, 32>}, {transform_indices = @transform_2, window_bounds = array<i64: 16, 1, 1>}, {pipeline_mode = #tpu.pipeline_mode<synchronous>, transform_indices = @transform_3, window_bounds = array<i64: 32, 8>}, {transform_indices = @transform_4, window_bounds = array<i64: 1, 16, 8, 8>}]} {
    %c0 = arith.constant 0 : index
    %c0_0 = arith.constant 0 : index
    %c0_1 = arith.constant 0 : index
    %c0_2 = arith.constant 0 : index
    %c0_3 = arith.constant 0 : index
    %0 = vector.load %arg3[%c0, %c0_0, %c0_1, %c0_2, %c0_3] : memref<1x16x8x4x32xf32, #tpu.memory_space<vmem>>, vector<1x16x8x4x32xf32>
    %1 = vector.shape_cast %0 : vector<1x16x8x4x32xf32> to vector<16x8x4x32xf32>
    %c0_4 = arith.constant 0 : index
    %c0_5 = arith.constant 0 : index
    %c0_6 = arith.constant 0 : index
    %c0_7 = arith.constant 0 : index
    %2 = vector.load %arg4[%c0_4, %c0_5, %c0_6, %c0_7] : memref<16x1x4x32xf32, #tpu.memory_space<vmem>>, vector<16x1x4x32xf32>
    %3 = vector.broadcast %2 : vector<16x1x4x32xf32> to vector<16x8x4x32xf32>
    %4 = arith.mulf %1, %3 : vector<16x8x4x32xf32>
    %cst = arith.constant dense<0.000000e+00> : vector<16x8x32xf32>
    %5 = vector.multi_reduction <add>, %4, %cst [2] : vector<16x8x4x32xf32> to vector<16x8x32xf32>
    %6 = vector.shape_cast %5 : vector<16x8x32xf32> to vector<128x32xf32>
    %c0_8 = arith.constant 0 : index
    %c0_9 = arith.constant 0 : index
    %7 = vector.load %arg6[%c0_8, %c0_9] : memref<32x8xf32, #tpu.memory_space<vmem>>, vector<32x8xf32>
    %cst_10 = arith.constant dense<0.000000e+00> : vector<128x8xf32>
    %8 = tpu.matmul %6, %7, %cst_10 {dimension_numbers = #tpu.dot_dimension_numbers<[1], [0], [0], [1], [0, 0, 1, 1], [], []>} : vector<128x32xf32>, vector<32x8xf32>, vector<128x8xf32> -> vector<128x8xf32>
    %9 = vector.shape_cast %8 : vector<128x8xf32> to vector<16x8x8xf32>
    %c0_11 = arith.constant 0 : index
    %c0_12 = arith.constant 0 : index
    %c0_13 = arith.constant 0 : index
    %10 = vector.load %arg5[%c0_11, %c0_12, %c0_13] : memref<16x1x1xf32, #tpu.memory_space<vmem>>, vector<16x1x1xf32>
    %11 = vector.broadcast %10 : vector<16x1x1xf32> to vector<16x8x8xf32>
    %12 = arith.addf %9, %11 : vector<16x8x8xf32>
    %cst_14 = arith.constant 0.000000e+00 : f32
    %cst_15 = arith.constant 6.000000e+00 : f32
    %13 = vector.broadcast %cst_14 : f32 to vector<16x8x8xf32>
    %14 = arith.maximumf %13, %12 : vector<16x8x8xf32>
    %15 = vector.broadcast %cst_15 : f32 to vector<16x8x8xf32>
    %16 = arith.minimumf %15, %14 : vector<16x8x8xf32>
    %c0_16 = arith.constant 0 : index
    %c0_17 = arith.constant 0 : index
    %c0_18 = arith.constant 0 : index
    %c0_19 = arith.constant 0 : index
    %17 = vector.load %arg7[%c0_16, %c0_17, %c0_18, %c0_19] : memref<1x16x8x8xf32, #tpu.memory_space<vmem>>, vector<1x16x8x8xf32>
    %18 = vector.shape_cast %17 : vector<1x16x8x8xf32> to vector<16x8x8xf32>
    %19 = vector.shape_cast %16 : vector<16x8x8xf32> to vector<1x16x8x8xf32>
    tpu.vector_store %arg7[%c0_16, %c0_17, %c0_18, %c0_19], %19 {strides = array<i32>} : memref<1x16x8x8xf32, #tpu.memory_space<vmem>>, vector<1x16x8x8xf32>,
    return
  }
  func.func @transform_0(%arg0: i32, %arg1: i32, %arg2: i32) -> (i32, i32, i32, i32, i32) {
    %c0_i32 = arith.constant 0 : i32
    %c0_i32_0 = arith.constant 0 : i32
    %c0_i32_1 = arith.constant 0 : i32
    return %arg1, %arg0, %arg2, %c0_i32, %c0_i32_0 : i32, i32, i32, i32, i32
  }
  func.func @transform_1(%arg0: i32, %arg1: i32, %arg2: i32) -> (i32, i32, i32, i32) {
    %c0_i32 = arith.constant 0 : i32
    %c0_i32_0 = arith.constant 0 : i32
    %c0_i32_1 = arith.constant 0 : i32
    %c0_i32_2 = arith.constant 0 : i32
    return %arg0, %c0_i32, %c0_i32_0, %c0_i32_1 : i32, i32, i32, i32
  }
  func.func @transform_2(%arg0: i32, %arg1: i32, %arg2: i32) -> (i32, i32, i32) {
    %c0_i32 = arith.constant 0 : i32
    %c0_i32_0 = arith.constant 0 : i32
    %c0_i32_1 = arith.constant 0 : i32
    return %arg0, %c0_i32, %c0_i32_0 : i32, i32, i32
  }
  func.func @transform_3(%arg0: i32, %arg1: i32, %arg2: i32) -> (i32, i32) {
    %c0_i32 = arith.constant 0 : i32
    %c0_i32_0 = arith.constant 0 : i32
    %c0_i32_1 = arith.constant 0 : i32
    return %c0_i32, %c0_i32_0 : i32, i32
  }
  func.func @transform_4(%arg0: i32, %arg1: i32, %arg2: i32) -> (i32, i32, i32, i32) {
    %c0_i32 = arith.constant 0 : i32
    %c0_i32_0 = arith.constant 0 : i32
    return %arg1, %arg0, %arg2, %c0_i32 : i32, i32, i32, i32
  }
}

</mosaic_0001>

<llo_original>
// kernel: tpu_custom_call.1
$region0: #{tpu_custom_call.1}
  #allocation0 [shape = 'u32[]', space=smem, size = 0x4, offset = 0x4, fixed_abs, tag = 'smem constant byte address 0x4 - core index']
  #allocation1 [shape = 'u32[72,128]{1,0:T(1,128)}', space=vmem, size = 0x9000, scoped, tag = 'internal scratch']
  %s0 = inlined_call_operand.hbm [shape: f32[2,16,8,4,32], index: 0, kind: input, shape index: {}]
  %s1 = inlined_call_operand.hbm [shape: f32[16,1,4,32], index: 1, kind: input, shape index: {}]
  %s2 = inlined_call_operand.vmem [shape: f32[16,1,1], index: 2, kind: input, shape index: {}]
  %s3 = inlined_call_operand.vmem [shape: f32[32,8], index: 3, kind: input, shape index: {}]
  %s4 = inlined_call_operand.vmem [shape: f32[2,16,8,8], index: 4, kind: output, shape index: {}]
  %s5 = sld [smem:[#allocation0]]
  $region57: #{tpu_custom_call.1} parent=0
    _
  %s7 = ssub.s32 1, %s5
  %s8 = scalar_select 0, %s7, %s5
  $region1: #{tpu_custom_call.1} parent=0
    #allocation2 [shape = 'u8[524288]{0}', space=vmem, size = 0x80000, scoped, tag = 'input window, operand 0']
    #allocation3 [shape = 's32[2]{0}', space=sflag, size = 0x8, scoped, tag = 'scoped memory for tpu_custom_call.1']
    #allocation4 [shape = 'u8[32768]{0}', space=vmem, size = 0x8000, scoped, tag = 'input window, operand 1, single buffered']
    #allocation5 [shape = 's32[1]{0}', space=sflag, size = 0x4, scoped, tag = 'scoped memory for tpu_custom_call.1']
    %9 = vsyncpa [#allocation3], 0
    %s10 = scalar_lea.sflag [#allocation3], 1
    %11 = vsyncpa %s10, 0
    %12 = vsyncpa [#allocation5], 0
    loop: start=0, step=1, limit=4
    $region2: #{tpu_custom_call.1} parent=1 // loop_pre_header
      _
    $region3: #{tpu_custom_call.1} parent=1 // loop_header
      %s14 = sphi 0, %s18
      %p15 = scmp.ge.s32.totalorder %s14, 4
      %s21 = sphi 0, %s40
      %s22 = sphi 0, %s36
      %s23 = sphi 0, %s32
      %s24 = sphi 0, %s21
      %s25 = sphi 0, %s22
      %s26 = sphi 0, %s23
      %s27 = sphi 0, %s24
      %s28 = sphi 0, %s25
      %s29 = sphi 0, %s26
      %s47 = sphi 0, %s49
      %s50 = sphi 0, %s47
      %s51 = sphi 0, %s50
      %s67 = sphi 0, %s51
      %s73 = sphi 0, %s75
      %s76 = sphi 0, %s73
      %s77 = sphi 0, %s76
      %s93 = sphi 0, %s77
      %s99 = sphi 0, %s101
      %s102 = sphi 0, %s99
      %s103 = sphi 0, %s102
      %s119 = sphi 0, %s103
      %s123 = sphi 0, %s123
      %s125 = sphi 0, %s123
      %s126 = sphi 0, %s125
      %s140 = sphi 0, %s126
      %s150 = sphi 0, %s152
      %s153 = sphi 0, %s150
      %s154 = sphi 0, %s153
      %s170 = sphi 0, %s154
    $region4: #{tpu_custom_call.1} parent=1 // loop_header_branch
      %17 = sbr.rel (%p15) target = $region8
    $region5: #{tpu_custom_call.1} parent=1 // loop_body
      %s19 = ssub.s32 %s14, 1
      %s20 = ssub.s32 %s14, 2
      %s30 = sadd.s32 1, %s23
      %p31 = scmp.ge.s32.totalorder %s30, 1
      %s32 = scalar_select %p31, 0, %s30
      %s33 = sadd.s32 1, %s22
      %s34 = scalar_select %p31, %s33, %s22
      %p35 = scmp.ge.s32.totalorder %s34, 2
      %s36 = scalar_select %p35, 0, %s34
      %s37 = sadd.s32 1, %s21
      %s38 = scalar_select %p35, %s37, %s21
      %p39 = scmp.ge.s32.totalorder %s38, 1
      %s40 = scalar_select %p39, 0, %s38
      %s41 = ssub.s32 %s22, %s36
      %s42 = ssub.s32 %s21, %s40
      %s43 = sor.u32 %s41, %s42
      %s44 = ssub.s32 %s23, %s32
      %s45 = sor.u32 %s43, %s44
      %p46 = scmp.eq.s32.totalorder %s45, 0
      %s48 = sadd.s32 %s47, 1
      %s49 = scalar_select %p46, %s47, %s48
      %p52 = pneg %p46
      %p53 = scmp.eq.s32.totalorder %s14, 1
      %p54 = por %p52, %p53
      %p55 = scmp.ne.s32.totalorder %s47, %s50
      %p56 = scmp.eq.s32.totalorder %s14, 0
      %p57 = por %p55, %p56
      %p58 = scmp.ne.s32.totalorder %s47, %s50
      %p59 = scmp.eq.s32.totalorder %s19, 1
      %p60 = por %p58, %p59
      %p61 = scmp.ne.s32.totalorder %s50, %s51
      %p62 = scmp.eq.s32.totalorder %s19, 0
      %p63 = por %p61, %p62
      %p64 = scmp.ne.s32.totalorder %s50, %s51
      %p65 = scmp.eq.s32.totalorder %s20, 1
      %p66 = por %p64, %p65
      %p68 = scmp.ne.s32.totalorder %s51, %s67
      %p69 = scmp.eq.s32.totalorder %s20, 0
      %p70 = por %p68, %p69
      %s71 = ssub.s32 %s21, %s40
      %p72 = scmp.eq.s32.totalorder %s71, 0
      %s74 = sadd.s32 %s73, 1
      %s75 = scalar_select %p72, %s73, %s74
      %p78 = pneg %p72
      %p79 = scmp.eq.s32.totalorder %s14, 1
      %p80 = por %p78, %p79
      %p81 = scmp.ne.s32.totalorder %s73, %s76
      %p82 = scmp.eq.s32.totalorder %s14, 0
      %p83 = por %p81, %p82
      %p84 = scmp.ne.s32.totalorder %s73, %s76
      %p85 = scmp.eq.s32.totalorder %s19, 1
      %p86 = por %p84, %p85
      %p87 = scmp.ne.s32.totalorder %s76, %s77
      %p88 = scmp.eq.s32.totalorder %s19, 0
      %p89 = por %p87, %p88
      %p90 = scmp.ne.s32.totalorder %s76, %s77
      %p91 = scmp.eq.s32.totalorder %s20, 1
      %p92 = por %p90, %p91
      %p94 = scmp.ne.s32.totalorder %s77, %s93
      %p95 = scmp.eq.s32.totalorder %s20, 0
      %p96 = por %p94, %p95
      %s97 = ssub.s32 %s21, %s40
      %p98 = scmp.eq.s32.totalorder %s97, 0
      %s100 = sadd.s32 %s99, 1
      %s101 = scalar_select %p98, %s99, %s100
      %p104 = pneg %p98
      %p105 = scmp.eq.s32.totalorder %s14, 1
      %p106 = por %p104, %p105
      %p107 = scmp.ne.s32.totalorder %s99, %s102
      %p108 = scmp.eq.s32.totalorder %s14, 0
      %p109 = por %p107, %p108
      %p110 = scmp.ne.s32.totalorder %s99, %s102
      %p111 = scmp.eq.s32.totalorder %s19, 1
      %p112 = por %p110, %p111
      %p113 = scmp.ne.s32.totalorder %s102, %s103
      %p114 = scmp.eq.s32.totalorder %s19, 0
      %p115 = por %p113, %p114
      %p116 = scmp.ne.s32.totalorder %s102, %s103
      %p117 = scmp.eq.s32.totalorder %s20, 1
      %p118 = por %p116, %p117
      %p120 = scmp.ne.s32.totalorder %s103, %s119
      %p121 = scmp.eq.s32.totalorder %s20, 0
      %p122 = por %p120, %p121
      %s124 = sadd.s32 %s123, 1
      %p127 = scmp.eq.s32.totalorder %s14, 1
      %p128 = scmp.ne.s32.totalorder %s123, %s125
      %p129 = scmp.eq.s32.totalorder %s14, 0
      %p130 = por %p128, %p129
      %p131 = scmp.ne.s32.totalorder %s123, %s125
      %p132 = scmp.eq.s32.totalorder %s19, 1
      %p133 = por %p131, %p132
      %p134 = scmp.ne.s32.totalorder %s125, %s126
      %p135 = scmp.eq.s32.totalorder %s19, 0
      %p136 = por %p134, %p135
      %p137 = scmp.ne.s32.totalorder %s125, %s126
      %p138 = scmp.eq.s32.totalorder %s20, 1
      %p139 = por %p137, %p138
      %p141 = scmp.ne.s32.totalorder %s126, %s140
      %p142 = scmp.eq.s32.totalorder %s20, 0
      %p143 = por %p141, %p142
      %s144 = ssub.s32 %s22, %s36
      %s145 = ssub.s32 %s21, %s40
      %s146 = sor.u32 %s144, %s145
      %s147 = ssub.s32 %s23, %s32
      %s148 = sor.u32 %s146, %s147
      %p149 = scmp.eq.s32.totalorder %s148, 0
      %s151 = sadd.s32 %s150, 1
      %s152 = scalar_select %p149, %s150, %s151
      %p155 = pneg %p149
      %p156 = scmp.eq.s32.totalorder %s14, 1
      %p157 = por %p155, %p156
      %p158 = scmp.ne.s32.totalorder %s150, %s153
      %p159 = scmp.eq.s32.totalorder %s14, 0
      %p160 = por %p158, %p159
      %p161 = scmp.ne.s32.totalorder %s150, %s153
      %p162 = scmp.eq.s32.totalorder %s19, 1
      %p163 = por %p161, %p162
      %p164 = scmp.ne.s32.totalorder %s153, %s154
      %p165 = scmp.eq.s32.totalorder %s19, 0
      %p166 = por %p164, %p165
      %p167 = scmp.ne.s32.totalorder %s153, %s154
      %p168 = scmp.eq.s32.totalorder %s20, 1
      %p169 = por %p167, %p168
      %p171 = scmp.ne.s32.totalorder %s154, %s170
      %p172 = scmp.eq.s32.totalorder %s20, 0
      %p173 = por %p171, %p172
      %p174 = scmp.le.s32.totalorder 1, %s14
      %p175 = scmp.lt.s32.totalorder %s14, 3
      %p176 = pnand %p174, %p175
      %p177 = pneg %p176
      // Predicated region
      $region9: #{tpu_custom_call.1} parent=5 // pred_check
        _
      $region10: #{tpu_custom_call.1} parent=5 // pred_check_branch
        %179 = sbr.rel (%p176) target = $region12
      $region11: #{tpu_custom_call.1} parent=5 // pred_region
        %s180 = ssub.s32 %s14, 1
        // Predicated region
        $region13: #{tpu_custom_call.1} parent=11 // pred_check
          %p181 = pneg %p89
        $region14: #{tpu_custom_call.1} parent=11 // pred_check_branch
          %183 = sbr.rel (%p181) target = $region16
        $region15: #{tpu_custom_call.1} parent=11 // pred_region
          %s184 = smul.u32 16, %s24
          %186 = vsyncadd [#allocation5], 0
          %s187 = smul.addr %s184, 4
          %s188 = scalar_lea.hbm %s1, %s187
          %s189 = sshll.u32 %s188, 4
          %s190 = int_to_ptr.hbm [resolvable:$true] %s189
          %s191 = sshll.u32 [#allocation4], 4
          %s192 = int_to_ptr.vmem [resolvable:$true] %s191
          %197 = dma.hbm_to_vmem [thread:$0]  %s190, 1024, %s192, [#allocation5], 64, 64, 4
        $region16: #{tpu_custom_call.1} parent=11 // pred_fallthru
          _
        // Predicated region
        $region17: #{tpu_custom_call.1} parent=11 // pred_check
          %p198 = pneg %p115
        $region18: #{tpu_custom_call.1} parent=11 // pred_check_branch
          %200 = sbr.rel (%p198) target = $region20
        $region19: #{tpu_custom_call.1} parent=11 // pred_region
          %s201 = smul.u32 16, %s24
          %p202 = scmp.lt.s32.totalorder %s201, 15
          %s203 = scalar_select %p202, %s201, 15
          %s204 = scalar_lea.vmem %s2, %s203
          %s205 = smul.u32 16, %s24
        $region20: #{tpu_custom_call.1} parent=11 // pred_fallthru
          _
        // Predicated region
        $region21: #{tpu_custom_call.1} parent=11 // pred_check
          %p206 = pneg %p136
        $region22: #{tpu_custom_call.1} parent=11 // pred_check_branch
          %208 = sbr.rel (%p206) target = $region24
        $region23: #{tpu_custom_call.1} parent=11 // pred_region
          _
        $region24: #{tpu_custom_call.1} parent=11 // pred_fallthru
          _
      $region12: #{tpu_custom_call.1} parent=5 // pred_fallthru
        _
      %p209 = scmp.lt.s32.totalorder %s14, 2
      // Predicated region
      $region25: #{tpu_custom_call.1} parent=5 // pred_check
        %p210 = pneg %p209
      $region26: #{tpu_custom_call.1} parent=5 // pred_check_branch
        %212 = sbr.rel (%p210) target = $region28
      $region27: #{tpu_custom_call.1} parent=5 // pred_region
        // Predicated region
        $region29: #{tpu_custom_call.1} parent=27 // pred_check
          %p213 = pneg %p57
        $region30: #{tpu_custom_call.1} parent=27 // pred_check_branch
          %215 = sbr.rel (%p213) target = $region32
        $region31: #{tpu_custom_call.1} parent=27 // pred_region
          %s216 = sand.u32 %s47, 1
          %s217 = scalar_lea.sflag [#allocation3], %s216
          %s218 = sand.u32 %s47, 1
          %s219 = smul.addr %s218, 512
          %s220 = scalar_lea.vmem [#allocation2], %s219
          %s221 = smul.u32 16, %s21
          %s222 = smul.u32 8, %s23
          %224 = vsyncadd %s217, 0
          %s225 = smul.addr %s221, 8
          %s226 = sadd.s32 %s222, %s225
          %s227 = smul.addr %s22, 128
          %s228 = sadd.s32 %s226, %s227
          %s229 = smul.addr %s228, 4
          %s230 = scalar_lea.hbm %s0, %s229
          %s231 = sshll.u32 %s230, 4
          %s232 = int_to_ptr.hbm [resolvable:$true] %s231
          %s233 = sshll.u32 %s220, 4
          %s234 = int_to_ptr.vmem [resolvable:$true] %s233
          %239 = dma.hbm_to_vmem [thread:$0]  %s232, 8192, %s234, %s217, 64, 64, 4
        $region32: #{tpu_custom_call.1} parent=27 // pred_fallthru
          _
      $region28: #{tpu_custom_call.1} parent=5 // pred_fallthru
        _
      %p240 = scmp.le.s32.totalorder 1, %s14
      %p241 = scmp.lt.s32.totalorder %s14, 3
      %p242 = pnand %p240, %p241
      %p243 = pneg %p242
      // Predicated region
      $region33: #{tpu_custom_call.1} parent=5 // pred_check
        _
      $region34: #{tpu_custom_call.1} parent=5 // pred_check_branch
        %245 = sbr.rel (%p242) target = $region36
      $region35: #{tpu_custom_call.1} parent=5 // pred_region
        %s246 = ssub.s32 %s14, 1
        %s247 = sand.u32 %s50, 1
        %s248 = scalar_lea.sflag [#allocation3], %s247
        %s249 = sand.u32 %s50, 1
        %s250 = smul.addr %s249, 512
        %s251 = scalar_lea.vmem [#allocation2], %s250
        // Predicated region
        $region37: #{tpu_custom_call.1} parent=35 // pred_check
          %p252 = pneg %p63
        $region38: #{tpu_custom_call.1} parent=35 // pred_check_branch
          %254 = sbr.rel (%p252) target = $region40
        $region39: #{tpu_custom_call.1} parent=35 // pred_region
          %256 = dma.done %s248, 8192
        $region40: #{tpu_custom_call.1} parent=35 // pred_fallthru
          _
        // Predicated region
        $region41: #{tpu_custom_call.1} parent=35 // pred_check
          %p257 = pneg %p89
        $region42: #{tpu_custom_call.1} parent=35 // pred_check_branch
          %259 = sbr.rel (%p257) target = $region44
        $region43: #{tpu_custom_call.1} parent=35 // pred_region
          %261 = dma.done [#allocation5], 1024
        $region44: #{tpu_custom_call.1} parent=35 // pred_fallthru
          _
        %s262 = sand.u32 %s50, 1
        %s263 = scalar_lea.sflag [#allocation3], %s262
        %s264 = sand.u32 %s50, 1
        %s265 = smul.addr %s264, 512
        %s266 = scalar_lea.vmem [#allocation2], %s265
        %p267 = pneg %p63
        %p268 = pneg %p60
        %p269 = pneg %p89
        %p270 = pneg %p86
        %s271 = smul.u32 16, %s24
        %p272 = scmp.lt.s32.totalorder %s271, 15
        %s273 = scalar_select %p272, %s271, 15
        %s274 = scalar_lea.vmem %s2, %s273
        %p275 = pneg %p115
        %p276 = pneg %p112
        %p277 = pneg %p136
        %p278 = pneg %p133
        %p279 = pneg %p166
        %p280 = pneg %p163
        %s281 = smul.u32 16, %s24
        %p282 = scmp.lt.s32.totalorder %s25, 1
        %s283 = scalar_select %p282, %s25, 1
        %p284 = scmp.lt.s32.totalorder %s281, 15
        %s285 = scalar_select %p284, %s281, 15
        %p286 = scmp.lt.s32.totalorder %s26, 0
        %s287 = scalar_select %p286, %s26, 0
        %s288 = sadd.s32 %s287, %s285
        %s289 = smul.addr %s283, 16
        %s290 = sadd.s32 %s288, %s289
        %s291 = smul.addr %s290, 8
        %s292 = scalar_lea.vmem %s4, %s291
        %s293 = smul.u32 16, %s24
        %s294 = smul.u32 8, %s26
        %s295 = smul.u32 16, %s24
        %s296 = smul.u32 16, %s24
        %p297 = scmp.lt.s32.totalorder %s296, 15
        %s298 = scalar_select %p297, %s296, 15
        %s299 = scalar_lea.vmem %s2, %s298
        %s300 = smul.u32 16, %s24
        %s301 = smul.u32 16, %s24
        %p302 = scmp.lt.s32.totalorder %s25, 1
        %s303 = scalar_select %p302, %s25, 1
        %p304 = scmp.lt.s32.totalorder %s301, 15
        %s305 = scalar_select %p304, %s301, 15
        %p306 = scmp.lt.s32.totalorder %s26, 0
        %s307 = scalar_select %p306, %s26, 0
        %s308 = sadd.s32 %s307, %s305
        %s309 = smul.addr %s303, 16
        %s310 = sadd.s32 %s308, %s309
        %s311 = smul.addr %s310, 8
        %s312 = scalar_lea.vmem %s4, %s311
        %s313 = smul.u32 16, %s24
        %v314 = vld [vmem:[%s251] sm:$0xf]
        %v315 = vld [vmem:[%s251 + $0x4] sm:$0xf]
        %v316 = vld [vmem:[%s251 + $0x8] sm:$0xf]
        %v317 = vld [vmem:[%s251 + $0xc] sm:$0xf]
        %v318 = vld [vmem:[%s251 + $0x10] sm:$0xf]
        %v319 = vld [vmem:[%s251 + $0x14] sm:$0xf]
        %v320 = vld [vmem:[%s251 + $0x18] sm:$0xf]
        %v321 = vld [vmem:[%s251 + $0x1c] sm:$0xf]
        %v322 = vld [vmem:[%s251 + $0x20] sm:$0xf]
        %v323 = vld [vmem:[%s251 + $0x24] sm:$0xf]
        %v324 = vld [vmem:[%s251 + $0x28] sm:$0xf]
        %v325 = vld [vmem:[%s251 + $0x2c] sm:$0xf]
        %v326 = vld [vmem:[%s251 + $0x30] sm:$0xf]
        %v327 = vld [vmem:[%s251 + $0x34] sm:$0xf]
        %v328 = vld [vmem:[%s251 + $0x38] sm:$0xf]
        %v329 = vld [vmem:[%s251 + $0x3c] sm:$0xf]
        %v330 = vld [vmem:[%s251 + $0x40] sm:$0xf]
        %v331 = vld [vmem:[%s251 + $0x44] sm:$0xf]
        %v332 = vld [vmem:[%s251 + $0x48] sm:$0xf]
        %v333 = vld [vmem:[%s251 + $0x4c] sm:$0xf]
        %v334 = vld [vmem:[%s251 + $0x50] sm:$0xf]
        %v335 = vld [vmem:[%s251 + $0x54] sm:$0xf]
        %v336 = vld [vmem:[%s251 + $0x58] sm:$0xf]
        %v337 = vld [vmem:[%s251 + $0x5c] sm:$0xf]
        %v338 = vld [vmem:[%s251 + $0x60] sm:$0xf]
        %v339 = vld [vmem:[%s251 + $0x64] sm:$0xf]
        %v340 = vld [vmem:[%s251 + $0x68] sm:$0xf]
        %v341 = vld [vmem:[%s251 + $0x6c] sm:$0xf]
        %v342 = vld [vmem:[%s251 + $0x70] sm:$0xf]
        %v343 = vld [vmem:[%s251 + $0x74] sm:$0xf]
        %v344 = vld [vmem:[%s251 + $0x78] sm:$0xf]
        %v345 = vld [vmem:[%s251 + $0x7c] sm:$0xf]
        %v346 = vld [vmem:[%s251 + $0x80] sm:$0xf]
        %v347 = vld [vmem:[%s251 + $0x84] sm:$0xf]
        %v348 = vld [vmem:[%s251 + $0x88] sm:$0xf]
        %v349 = vld [vmem:[%s251 + $0x8c] sm:$0xf]
        %v350 = vld [vmem:[%s251 + $0x90] sm:$0xf]
        %v351 = vld [vmem:[%s251 + $0x94] sm:$0xf]
        %v352 = vld [vmem:[%s251 + $0x98] sm:$0xf]
        %v353 = vld [vmem:[%s251 + $0x9c] sm:$0xf]
        %v354 = vld [vmem:[%s251 + $0xa0] sm:$0xf]
        %v355 = vld [vmem:[%s251 + $0xa4] sm:$0xf]
        %v356 = vld [vmem:[%s251 + $0xa8] sm:$0xf]
        %v357 = vld [vmem:[%s251 + $0xac] sm:$0xf]
        %v358 = vld [vmem:[%s251 + $0xb0] sm:$0xf]
        %v359 = vld [vmem:[%s251 + $0xb4] sm:$0xf]
        %v360 = vld [vmem:[%s251 + $0xb8] sm:$0xf]
        %v361 = vld [vmem:[%s251 + $0xbc] sm:$0xf]
        %v362 = vld [vmem:[%s251 + $0xc0] sm:$0xf]
        %v363 = vld [vmem:[%s251 + $0xc4] sm:$0xf]
        %v364 = vld [vmem:[%s251 + $0xc8] sm:$0xf]
        %v365 = vld [vmem:[%s251 + $0xcc] sm:$0xf]
        %v366 = vld [vmem:[%s251 + $0xd0] sm:$0xf]
        %v367 = vld [vmem:[%s251 + $0xd4] sm:$0xf]
        %v368 = vld [vmem:[%s251 + $0xd8] sm:$0xf]
        %v369 = vld [vmem:[%s251 + $0xdc] sm:$0xf]
        %v370 = vld [vmem:[%s251 + $0xe0] sm:$0xf]
        %v371 = vld [vmem:[%s251 + $0xe4] sm:$0xf]
        %v372 = vld [vmem:[%s251 + $0xe8] sm:$0xf]
        %v373 = vld [vmem:[%s251 + $0xec] sm:$0xf]
        %v374 = vld [vmem:[%s251 + $0xf0] sm:$0xf]
        %v375 = vld [vmem:[%s251 + $0xf4] sm:$0xf]
        %v376 = vld [vmem:[%s251 + $0xf8] sm:$0xf]
        %v377 = vld [vmem:[%s251 + $0xfc] sm:$0xf]
        %v378 = vld [vmem:[%s251 + $0x100] sm:$0xf]
        %v379 = vld [vmem:[%s251 + $0x104] sm:$0xf]
        %v380 = vld [vmem:[%s251 + $0x108] sm:$0xf]
        %v381 = vld [vmem:[%s251 + $0x10c] sm:$0xf]
        %v382 = vld [vmem:[%s251 + $0x110] sm:$0xf]
        %v383 = vld [vmem:[%s251 + $0x114] sm:$0xf]
        %v384 = vld [vmem:[%s251 + $0x118] sm:$0xf]
        %v385 = vld [vmem:[%s251 + $0x11c] sm:$0xf]
        %v386 = vld [vmem:[%s251 + $0x120] sm:$0xf]
        %v387 = vld [vmem:[%s251 + $0x124] sm:$0xf]
        %v388 = vld [vmem:[%s251 + $0x128] sm:$0xf]
        %v389 = vld [vmem:[%s251 + $0x12c] sm:$0xf]
        %v390 = vld [vmem:[%s251 + $0x130] sm:$0xf]
        %v391 = vld [vmem:[%s251 + $0x134] sm:$0xf]
        %v392 = vld [vmem:[%s251 + $0x138] sm:$0xf]
        %v393 = vld [vmem:[%s251 + $0x13c] sm:$0xf]
        %v394 = vld [vmem:[%s251 + $0x140] sm:$0xf]
        %v395 = vld [vmem:[%s251 + $0x144] sm:$0xf]
        %v396 = vld [vmem:[%s251 + $0x148] sm:$0xf]
        %v397 = vld [vmem:[%s251 + $0x14c] sm:$0xf]
        %v398 = vld [vmem:[%s251 + $0x150] sm:$0xf]
        %v399 = vld [vmem:[%s251 + $0x154] sm:$0xf]
        %v400 = vld [vmem:[%s251 + $0x158] sm:$0xf]
        %v401 = vld [vmem:[%s251 + $0x15c] sm:$0xf]
        %v402 = vld [vmem:[%s251 + $0x160] sm:$0xf]
        %v403 = vld [vmem:[%s251 + $0x164] sm:$0xf]
        %v404 = vld [vmem:[%s251 + $0x168] sm:$0xf]
        %v405 = vld [vmem:[%s251 + $0x16c] sm:$0xf]
        %v406 = vld [vmem:[%s251 + $0x170] sm:$0xf]
        %v407 = vld [vmem:[%s251 + $0x174] sm:$0xf]
        %v408 = vld [vmem:[%s251 + $0x178] sm:$0xf]
        %v409 = vld [vmem:[%s251 + $0x17c] sm:$0xf]
        %v410 = vld [vmem:[%s251 + $0x180] sm:$0xf]
        %v411 = vld [vmem:[%s251 + $0x184] sm:$0xf]
        %v412 = vld [vmem:[%s251 + $0x188] sm:$0xf]
        %v413 = vld [vmem:[%s251 + $0x18c] sm:$0xf]
        %v414 = vld [vmem:[%s251 + $0x190] sm:$0xf]
        %v415 = vld [vmem:[%s251 + $0x194] sm:$0xf]
        %v416 = vld [vmem:[%s251 + $0x198] sm:$0xf]
        %v417 = vld [vmem:[%s251 + $0x19c] sm:$0xf]
        %v418 = vld [vmem:[%s251 + $0x1a0] sm:$0xf]
        %v419 = vld [vmem:[%s251 + $0x1a4] sm:$0xf]
        %v420 = vld [vmem:[%s251 + $0x1a8] sm:$0xf]
        %v421 = vld [vmem:[%s251 + $0x1ac] sm:$0xf]
        %v422 = vld [vmem:[%s251 + $0x1b0] sm:$0xf]
        %v423 = vld [vmem:[%s251 + $0x1b4] sm:$0xf]
        %v424 = vld [vmem:[%s251 + $0x1b8] sm:$0xf]
        %v425 = vld [vmem:[%s251 + $0x1bc] sm:$0xf]
        %v426 = vld [vmem:[%s251 + $0x1c0] sm:$0xf]
        %v427 = vld [vmem:[%s251 + $0x1c4] sm:$0xf]
        %v428 = vld [vmem:[%s251 + $0x1c8] sm:$0xf]
        %v429 = vld [vmem:[%s251 + $0x1cc] sm:$0xf]
        %v430 = vld [vmem:[%s251 + $0x1d0] sm:$0xf]
        %v431 = vld [vmem:[%s251 + $0x1d4] sm:$0xf]
        %v432 = vld [vmem:[%s251 + $0x1d8] sm:$0xf]
        %v433 = vld [vmem:[%s251 + $0x1dc] sm:$0xf]
        %v434 = vld [vmem:[%s251 + $0x1e0] sm:$0xf]
        %v435 = vld [vmem:[%s251 + $0x1e4] sm:$0xf]
        %v436 = vld [vmem:[%s251 + $0x1e8] sm:$0xf]
        %v437 = vld [vmem:[%s251 + $0x1ec] sm:$0xf]
        %v438 = vld [vmem:[%s251 + $0x1f0] sm:$0xf]
        %v439 = vld [vmem:[%s251 + $0x1f4] sm:$0xf]
        %v440 = vld [vmem:[%s251 + $0x1f8] sm:$0xf]
        %v441 = vld [vmem:[%s251 + $0x1fc] sm:$0xf]
        %v442 = vld [vmem:[#allocation4] sm:$0xf]
        %v443 = vld [vmem:[#allocation4 + $0x4] sm:$0xf]
        %v444 = vld [vmem:[#allocation4 + $0x8] sm:$0xf]
        %v445 = vld [vmem:[#allocation4 + $0xc] sm:$0xf]
        %v446 = vld [vmem:[#allocation4 + $0x10] sm:$0xf]
        %v447 = vld [vmem:[#allocation4 + $0x14] sm:$0xf]
        %v448 = vld [vmem:[#allocation4 + $0x18] sm:$0xf]
        %v449 = vld [vmem:[#allocation4 + $0x1c] sm:$0xf]
        %v450 = vld [vmem:[#allocation4 + $0x20] sm:$0xf]
        %v451 = vld [vmem:[#allocation4 + $0x24] sm:$0xf]
        %v452 = vld [vmem:[#allocation4 + $0x28] sm:$0xf]
        %v453 = vld [vmem:[#allocation4 + $0x2c] sm:$0xf]
        %v454 = vld [vmem:[#allocation4 + $0x30] sm:$0xf]
        %v455 = vld [vmem:[#allocation4 + $0x34] sm:$0xf]
        %v456 = vld [vmem:[#allocation4 + $0x38] sm:$0xf]
        %v457 = vld [vmem:[#allocation4 + $0x3c] sm:$0xf]
        %v458 = vmul.f32 %v314, %v442
        %v459 = vmul.f32 %v315, %v442
        %v460 = vmul.f32 %v316, %v442
        %v461 = vmul.f32 %v317, %v442
        %v462 = vmul.f32 %v318, %v442
        %v463 = vmul.f32 %v319, %v442
        %v464 = vmul.f32 %v320, %v442
        %v465 = vmul.f32 %v321, %v442
        %v466 = vmul.f32 %v322, %v443
        %v467 = vmul.f32 %v323, %v443
        %v468 = vmul.f32 %v324, %v443
        %v469 = vmul.f32 %v325, %v443
        %v470 = vmul.f32 %v326, %v443
        %v471 = vmul.f32 %v327, %v443
        %v472 = vmul.f32 %v328, %v443
        %v473 = vmul.f32 %v329, %v443
        %v474 = vmul.f32 %v330, %v444
        %v475 = vmul.f32 %v331, %v444
        %v476 = vmul.f32 %v332, %v444
        %v477 = vmul.f32 %v333, %v444
        %v478 = vmul.f32 %v334, %v444
        %v479 = vmul.f32 %v335, %v444
        %v480 = vmul.f32 %v336, %v444
        %v481 = vmul.f32 %v337, %v444
        %v482 = vmul.f32 %v338, %v445
        %v483 = vmul.f32 %v339, %v445
        %v484 = vmul.f32 %v340, %v445
        %v485 = vmul.f32 %v341, %v445
        %v486 = vmul.f32 %v342, %v445
        %v487 = vmul.f32 %v343, %v445
        %v488 = vmul.f32 %v344, %v445
        %v489 = vmul.f32 %v345, %v445
        %v490 = vmul.f32 %v346, %v446
        %v491 = vmul.f32 %v347, %v446
        %v492 = vmul.f32 %v348, %v446
        %v493 = vmul.f32 %v349, %v446
        %v494 = vmul.f32 %v350, %v446
        %v495 = vmul.f32 %v351, %v446
        %v496 = vmul.f32 %v352, %v446
        %v497 = vmul.f32 %v353, %v446
        %v498 = vmul.f32 %v354, %v447
        %v499 = vmul.f32 %v355, %v447
        %v500 = vmul.f32 %v356, %v447
        %v501 = vmul.f32 %v357, %v447
        %v502 = vmul.f32 %v358, %v447
        %v503 = vmul.f32 %v359, %v447
        %v504 = vmul.f32 %v360, %v447
        %v505 = vmul.f32 %v361, %v447
        %v506 = vmul.f32 %v362, %v448
        %v507 = vmul.f32 %v363, %v448
        %v508 = vmul.f32 %v364, %v448
        %v509 = vmul.f32 %v365, %v448
        %v510 = vmul.f32 %v366, %v448
        %v511 = vmul.f32 %v367, %v448
        %v512 = vmul.f32 %v368, %v448
        %v513 = vmul.f32 %v369, %v448
        %v514 = vmul.f32 %v370, %v449
        %v515 = vmul.f32 %v371, %v449
        %v516 = vmul.f32 %v372, %v449
        %v517 = vmul.f32 %v373, %v449
        %v518 = vmul.f32 %v374, %v449
        %v519 = vmul.f32 %v375, %v449
        %v520 = vmul.f32 %v376, %v449
        %v521 = vmul.f32 %v377, %v449
        %v522 = vmul.f32 %v378, %v450
        %v523 = vmul.f32 %v379, %v450
        %v524 = vmul.f32 %v380, %v450
        %v525 = vmul.f32 %v381, %v450
        %v526 = vmul.f32 %v382, %v450
        %v527 = vmul.f32 %v383, %v450
        %v528 = vmul.f32 %v384, %v450
        %v529 = vmul.f32 %v385, %v450
        %v530 = vmul.f32 %v386, %v451
        %v531 = vmul.f32 %v387, %v451
        %v532 = vmul.f32 %v388, %v451
        %v533 = vmul.f32 %v389, %v451
        %v534 = vmul.f32 %v390, %v451
        %v535 = vmul.f32 %v391, %v451
        %v536 = vmul.f32 %v392, %v451
        %v537 = vmul.f32 %v393, %v451
        %v538 = vmul.f32 %v394, %v452
        %v539 = vmul.f32 %v395, %v452
        %v540 = vmul.f32 %v396, %v452
        %v541 = vmul.f32 %v397, %v452
        %v542 = vmul.f32 %v398, %v452
        %v543 = vmul.f32 %v399, %v452
        %v544 = vmul.f32 %v400, %v452
        %v545 = vmul.f32 %v401, %v452
        %v546 = vmul.f32 %v402, %v453
        %v547 = vmul.f32 %v403, %v453
        %v548 = vmul.f32 %v404, %v453
        %v549 = vmul.f32 %v405, %v453
        %v550 = vmul.f32 %v406, %v453
        %v551 = vmul.f32 %v407, %v453
        %v552 = vmul.f32 %v408, %v453
        %v553 = vmul.f32 %v409, %v453
        %v554 = vmul.f32 %v410, %v454
        %v555 = vmul.f32 %v411, %v454
        %v556 = vmul.f32 %v412, %v454
        %v557 = vmul.f32 %v413, %v454
        %v558 = vmul.f32 %v414, %v454
        %v559 = vmul.f32 %v415, %v454
        %v560 = vmul.f32 %v416, %v454
        %v561 = vmul.f32 %v417, %v454
        %v562 = vmul.f32 %v418, %v455
        %v563 = vmul.f32 %v419, %v455
        %v564 = vmul.f32 %v420, %v455
        %v565 = vmul.f32 %v421, %v455
        %v566 = vmul.f32 %v422, %v455
        %v567 = vmul.f32 %v423, %v455
        %v568 = vmul.f32 %v424, %v455
        %v569 = vmul.f32 %v425, %v455
        %v570 = vmul.f32 %v426, %v456
        %v571 = vmul.f32 %v427, %v456
        %v572 = vmul.f32 %v428, %v456
        %v573 = vmul.f32 %v429, %v456
        %v574 = vmul.f32 %v430, %v456
        %v575 = vmul.f32 %v431, %v456
        %v576 = vmul.f32 %v432, %v456
        %v577 = vmul.f32 %v433, %v456
        %v578 = vmul.f32 %v434, %v457
        %v579 = vmul.f32 %v435, %v457
        %v580 = vmul.f32 %v436, %v457
        %v581 = vmul.f32 %v437, %v457
        %v582 = vmul.f32 %v438, %v457
        %v583 = vmul.f32 %v439, %v457
        %v584 = vmul.f32 %v440, %v457
        %v585 = vmul.f32 %v441, %v457
        %vm586 = vcmask 257024
        %v587 = vsel %vm586, %v458, 0.0
        %v588 = vrot.slane %v587, 4
        %v589 = vadd.f32 %v587, %v588
        %v590 = vrot.slane %v589, 2
        %v591 = vadd.f32 %v589, %v590
        %v592 = vrot.slane %v591, 1
        %v593 = vadd.f32 %v591, %v592
        %v594 = vsel %vm586, %v459, 0.0
        %v595 = vrot.slane %v594, 4
        %v596 = vadd.f32 %v594, %v595
        %v597 = vrot.slane %v596, 2
        %v598 = vadd.f32 %v596, %v597
        %v599 = vrot.slane %v598, 1
        %v600 = vadd.f32 %v598, %v599
        %v601 = vsel %vm586, %v460, 0.0
        %v602 = vrot.slane %v601, 4
        %v603 = vadd.f32 %v601, %v602
        %v604 = vrot.slane %v603, 2
        %v605 = vadd.f32 %v603, %v604
        %v606 = vrot.slane %v605, 1
        %v607 = vadd.f32 %v605, %v606
        %v608 = vsel %vm586, %v461, 0.0
        %v609 = vrot.slane %v608, 4
        %v610 = vadd.f32 %v608, %v609
        %v611 = vrot.slane %v610, 2
        %v612 = vadd.f32 %v610, %v611
        %v613 = vrot.slane %v612, 1
        %v614 = vadd.f32 %v612, %v613
        %v615 = vsel %vm586, %v462, 0.0
        %v616 = vrot.slane %v615, 4
        %v617 = vadd.f32 %v615, %v616
        %v618 = vrot.slane %v617, 2
        %v619 = vadd.f32 %v617, %v618
        %v620 = vrot.slane %v619, 1
        %v621 = vadd.f32 %v619, %v620
        %v622 = vsel %vm586, %v463, 0.0
        %v623 = vrot.slane %v622, 4
        %v624 = vadd.f32 %v622, %v623
        %v625 = vrot.slane %v624, 2
        %v626 = vadd.f32 %v624, %v625
        %v627 = vrot.slane %v626, 1
        %v628 = vadd.f32 %v626, %v627
        %v629 = vsel %vm586, %v464, 0.0
        %v630 = vrot.slane %v629, 4
        %v631 = vadd.f32 %v629, %v630
        %v632 = vrot.slane %v631, 2
        %v633 = vadd.f32 %v631, %v632
        %v634 = vrot.slane %v633, 1
        %v635 = vadd.f32 %v633, %v634
        %v636 = vsel %vm586, %v465, 0.0
        %v637 = vrot.slane %v636, 4
        %v638 = vadd.f32 %v636, %v637
        %v639 = vrot.slane %v638, 2
        %v640 = vadd.f32 %v638, %v639
        %v641 = vrot.slane %v640, 1
        %v642 = vadd.f32 %v640, %v641
        %v643 = vsel %vm586, %v466, 0.0
        %v644 = vrot.slane %v643, 4
        %v645 = vadd.f32 %v643, %v644
        %v646 = vrot.slane %v645, 2
        %v647 = vadd.f32 %v645, %v646
        %v648 = vrot.slane %v647, 1
        %v649 = vadd.f32 %v647, %v648
        %v650 = vsel %vm586, %v467, 0.0
        %v651 = vrot.slane %v650, 4
        %v652 = vadd.f32 %v650, %v651
        %v653 = vrot.slane %v652, 2
        %v654 = vadd.f32 %v652, %v653
        %v655 = vrot.slane %v654, 1
        %v656 = vadd.f32 %v654, %v655
        %v657 = vsel %vm586, %v468, 0.0
        %v658 = vrot.slane %v657, 4
        %v659 = vadd.f32 %v657, %v658
        %v660 = vrot.slane %v659, 2
        %v661 = vadd.f32 %v659, %v660
        %v662 = vrot.slane %v661, 1
        %v663 = vadd.f32 %v661, %v662
        %v664 = vsel %vm586, %v469, 0.0
        %v665 = vrot.slane %v664, 4
        %v666 = vadd.f32 %v664, %v665
        %v667 = vrot.slane %v666, 2
        %v668 = vadd.f32 %v666, %v667
        %v669 = vrot.slane %v668, 1
        %v670 = vadd.f32 %v668, %v669
        %v671 = vsel %vm586, %v470, 0.0
        %v672 = vrot.slane %v671, 4
        %v673 = vadd.f32 %v671, %v672
        %v674 = vrot.slane %v673, 2
        %v675 = vadd.f32 %v673, %v674
        %v676 = vrot.slane %v675, 1
        %v677 = vadd.f32 %v675, %v676
        %v678 = vsel %vm586, %v471, 0.0
        %v679 = vrot.slane %v678, 4
        %v680 = vadd.f32 %v678, %v679
        %v681 = vrot.slane %v680, 2
        %v682 = vadd.f32 %v680, %v681
        %v683 = vrot.slane %v682, 1
        %v684 = vadd.f32 %v682, %v683
        %v685 = vsel %vm586, %v472, 0.0
        %v686 = vrot.slane %v685, 4
        %v687 = vadd.f32 %v685, %v686
        %v688 = vrot.slane %v687, 2
        %v689 = vadd.f32 %v687, %v688
        %v690 = vrot.slane %v689, 1
        %v691 = vadd.f32 %v689, %v690
        %v692 = vsel %vm586, %v473, 0.0
        %v693 = vrot.slane %v692, 4
        %v694 = vadd.f32 %v692, %v693
        %v695 = vrot.slane %v694, 2
        %v696 = vadd.f32 %v694, %v695
        %v697 = vrot.slane %v696, 1
        %v698 = vadd.f32 %v696, %v697
        %v699 = vsel %vm586, %v474, 0.0
        %v700 = vrot.slane %v699, 4
        %v701 = vadd.f32 %v699, %v700
        %v702 = vrot.slane %v701, 2
        %v703 = vadd.f32 %v701, %v702
        %v704 = vrot.slane %v703, 1
        %v705 = vadd.f32 %v703, %v704
        %v706 = vsel %vm586, %v475, 0.0
        %v707 = vrot.slane %v706, 4
        %v708 = vadd.f32 %v706, %v707
        %v709 = vrot.slane %v708, 2
        %v710 = vadd.f32 %v708, %v709
        %v711 = vrot.slane %v710, 1
        %v712 = vadd.f32 %v710, %v711
        %v713 = vsel %vm586, %v476, 0.0
        %v714 = vrot.slane %v713, 4
        %v715 = vadd.f32 %v713, %v714
        %v716 = vrot.slane %v715, 2
        %v717 = vadd.f32 %v715, %v716
        %v718 = vrot.slane %v717, 1
        %v719 = vadd.f32 %v717, %v718
        %v720 = vsel %vm586, %v477, 0.0
        %v721 = vrot.slane %v720, 4
        %v722 = vadd.f32 %v720, %v721
        %v723 = vrot.slane %v722, 2
        %v724 = vadd.f32 %v722, %v723
        %v725 = vrot.slane %v724, 1
        %v726 = vadd.f32 %v724, %v725
        %v727 = vsel %vm586, %v478, 0.0
        %v728 = vrot.slane %v727, 4
        %v729 = vadd.f32 %v727, %v728
        %v730 = vrot.slane %v729, 2
        %v731 = vadd.f32 %v729, %v730
        %v732 = vrot.slane %v731, 1
        %v733 = vadd.f32 %v731, %v732
        %v734 = vsel %vm586, %v479, 0.0
        %v735 = vrot.slane %v734, 4
        %v736 = vadd.f32 %v734, %v735
        %v737 = vrot.slane %v736, 2
        %v738 = vadd.f32 %v736, %v737
        %v739 = vrot.slane %v738, 1
        %v740 = vadd.f32 %v738, %v739
        %v741 = vsel %vm586, %v480, 0.0
        %v742 = vrot.slane %v741, 4
        %v743 = vadd.f32 %v741, %v742
        %v744 = vrot.slane %v743, 2
        %v745 = vadd.f32 %v743, %v744
        %v746 = vrot.slane %v745, 1
        %v747 = vadd.f32 %v745, %v746
        %v748 = vsel %vm586, %v481, 0.0
        %v749 = vrot.slane %v748, 4
        %v750 = vadd.f32 %v748, %v749
        %v751 = vrot.slane %v750, 2
        %v752 = vadd.f32 %v750, %v751
        %v753 = vrot.slane %v752, 1
        %v754 = vadd.f32 %v752, %v753
        %v755 = vsel %vm586, %v482, 0.0
        %v756 = vrot.slane %v755, 4
        %v757 = vadd.f32 %v755, %v756
        %v758 = vrot.slane %v757, 2
        %v759 = vadd.f32 %v757, %v758
        %v760 = vrot.slane %v759, 1
        %v761 = vadd.f32 %v759, %v760
        %v762 = vsel %vm586, %v483, 0.0
        %v763 = vrot.slane %v762, 4
        %v764 = vadd.f32 %v762, %v763
        %v765 = vrot.slane %v764, 2
        %v766 = vadd.f32 %v764, %v765
        %v767 = vrot.slane %v766, 1
        %v768 = vadd.f32 %v766, %v767
        %v769 = vsel %vm586, %v484, 0.0
        %v770 = vrot.slane %v769, 4
        %v771 = vadd.f32 %v769, %v770
        %v772 = vrot.slane %v771, 2
        %v773 = vadd.f32 %v771, %v772
        %v774 = vrot.slane %v773, 1
        %v775 = vadd.f32 %v773, %v774
        %v776 = vsel %vm586, %v485, 0.0
        %v777 = vrot.slane %v776, 4
        %v778 = vadd.f32 %v776, %v777
        %v779 = vrot.slane %v778, 2
        %v780 = vadd.f32 %v778, %v779
        %v781 = vrot.slane %v780, 1
        %v782 = vadd.f32 %v780, %v781
        %v783 = vsel %vm586, %v486, 0.0
        %v784 = vrot.slane %v783, 4
        %v785 = vadd.f32 %v783, %v784
        %v786 = vrot.slane %v785, 2
        %v787 = vadd.f32 %v785, %v786
        %v788 = vrot.slane %v787, 1
        %v789 = vadd.f32 %v787, %v788
        %v790 = vsel %vm586, %v487, 0.0
        %v791 = vrot.slane %v790, 4
        %v792 = vadd.f32 %v790, %v791
        %v793 = vrot.slane %v792, 2
        %v794 = vadd.f32 %v792, %v793
        %v795 = vrot.slane %v794, 1
        %v796 = vadd.f32 %v794, %v795
        %v797 = vsel %vm586, %v488, 0.0
        %v798 = vrot.slane %v797, 4
        %v799 = vadd.f32 %v797, %v798
        %v800 = vrot.slane %v799, 2
        %v801 = vadd.f32 %v799, %v800
        %v802 = vrot.slane %v801, 1
        %v803 = vadd.f32 %v801, %v802
        %v804 = vsel %vm586, %v489, 0.0
        %v805 = vrot.slane %v804, 4
        %v806 = vadd.f32 %v804, %v805
        %v807 = vrot.slane %v806, 2
        %v808 = vadd.f32 %v806, %v807
        %v809 = vrot.slane %v808, 1
        %v810 = vadd.f32 %v808, %v809
        %v811 = vsel %vm586, %v490, 0.0
        %v812 = vrot.slane %v811, 4
        %v813 = vadd.f32 %v811, %v812
        %v814 = vrot.slane %v813, 2
        %v815 = vadd.f32 %v813, %v814
        %v816 = vrot.slane %v815, 1
        %v817 = vadd.f32 %v815, %v816
        %v818 = vsel %vm586, %v491, 0.0
        %v819 = vrot.slane %v818, 4
        %v820 = vadd.f32 %v818, %v819
        %v821 = vrot.slane %v820, 2
        %v822 = vadd.f32 %v820, %v821
        %v823 = vrot.slane %v822, 1
        %v824 = vadd.f32 %v822, %v823
        %v825 = vsel %vm586, %v492, 0.0
        %v826 = vrot.slane %v825, 4
        %v827 = vadd.f32 %v825, %v826
        %v828 = vrot.slane %v827, 2
        %v829 = vadd.f32 %v827, %v828
        %v830 = vrot.slane %v829, 1
        %v831 = vadd.f32 %v829, %v830
        %v832 = vsel %vm586, %v493, 0.0
        %v833 = vrot.slane %v832, 4
        %v834 = vadd.f32 %v832, %v833
        %v835 = vrot.slane %v834, 2
        %v836 = vadd.f32 %v834, %v835
        %v837 = vrot.slane %v836, 1
        %v838 = vadd.f32 %v836, %v837
        %v839 = vsel %vm586, %v494, 0.0
        %v840 = vrot.slane %v839, 4
        %v841 = vadd.f32 %v839, %v840
        %v842 = vrot.slane %v841, 2
        %v843 = vadd.f32 %v841, %v842
        %v844 = vrot.slane %v843, 1
        %v845 = vadd.f32 %v843, %v844
        %v846 = vsel %vm586, %v495, 0.0
        %v847 = vrot.slane %v846, 4
        %v848 = vadd.f32 %v846, %v847
        %v849 = vrot.slane %v848, 2
        %v850 = vadd.f32 %v848, %v849
        %v851 = vrot.slane %v850, 1
        %v852 = vadd.f32 %v850, %v851
        %v853 = vsel %vm586, %v496, 0.0
        %v854 = vrot.slane %v853, 4
        %v855 = vadd.f32 %v853, %v854
        %v856 = vrot.slane %v855, 2
        %v857 = vadd.f32 %v855, %v856
        %v858 = vrot.slane %v857, 1
        %v859 = vadd.f32 %v857, %v858
        %v860 = vsel %vm586, %v497, 0.0
        %v861 = vrot.slane %v860, 4
        %v862 = vadd.f32 %v860, %v861
        %v863 = vrot.slane %v862, 2
        %v864 = vadd.f32 %v862, %v863
        %v865 = vrot.slane %v864, 1
        %v866 = vadd.f32 %v864, %v865
        %v867 = vsel %vm586, %v498, 0.0
        %v868 = vrot.slane %v867, 4
        %v869 = vadd.f32 %v867, %v868
        %v870 = vrot.slane %v869, 2
        %v871 = vadd.f32 %v869, %v870
        %v872 = vrot.slane %v871, 1
        %v873 = vadd.f32 %v871, %v872
        %v874 = vsel %vm586, %v499, 0.0
        %v875 = vrot.slane %v874, 4
        %v876 = vadd.f32 %v874, %v875
        %v877 = vrot.slane %v876, 2
        %v878 = vadd.f32 %v876, %v877
        %v879 = vrot.slane %v878, 1
        %v880 = vadd.f32 %v878, %v879
        %v881 = vsel %vm586, %v500, 0.0
        %v882 = vrot.slane %v881, 4
        %v883 = vadd.f32 %v881, %v882
        %v884 = vrot.slane %v883, 2
        %v885 = vadd.f32 %v883, %v884
        %v886 = vrot.slane %v885, 1
        %v887 = vadd.f32 %v885, %v886
        %v888 = vsel %vm586, %v501, 0.0
        %v889 = vrot.slane %v888, 4
        %v890 = vadd.f32 %v888, %v889
        %v891 = vrot.slane %v890, 2
        %v892 = vadd.f32 %v890, %v891
        %v893 = vrot.slane %v892, 1
        %v894 = vadd.f32 %v892, %v893
        %v895 = vsel %vm586, %v502, 0.0
        %v896 = vrot.slane %v895, 4
        %v897 = vadd.f32 %v895, %v896
        %v898 = vrot.slane %v897, 2
        %v899 = vadd.f32 %v897, %v898
        %v900 = vrot.slane %v899, 1
        %v901 = vadd.f32 %v899, %v900
        %v902 = vsel %vm586, %v503, 0.0
        %v903 = vrot.slane %v902, 4
        %v904 = vadd.f32 %v902, %v903
        %v905 = vrot.slane %v904, 2
        %v906 = vadd.f32 %v904, %v905
        %v907 = vrot.slane %v906, 1
        %v908 = vadd.f32 %v906, %v907
        %v909 = vsel %vm586, %v504, 0.0
        %v910 = vrot.slane %v909, 4
        %v911 = vadd.f32 %v909, %v910
        %v912 = vrot.slane %v911, 2
        %v913 = vadd.f32 %v911, %v912
        %v914 = vrot.slane %v913, 1
        %v915 = vadd.f32 %v913, %v914
        %v916 = vsel %vm586, %v505, 0.0
        %v917 = vrot.slane %v916, 4
        %v918 = vadd.f32 %v916, %v917
        %v919 = vrot.slane %v918, 2
        %v920 = vadd.f32 %v918, %v919
        %v921 = vrot.slane %v920, 1
        %v922 = vadd.f32 %v920, %v921
        %v923 = vsel %vm586, %v506, 0.0
        %v924 = vrot.slane %v923, 4
        %v925 = vadd.f32 %v923, %v924
        %v926 = vrot.slane %v925, 2
        %v927 = vadd.f32 %v925, %v926
        %v928 = vrot.slane %v927, 1
        %v929 = vadd.f32 %v927, %v928
        %v930 = vsel %vm586, %v507, 0.0
        %v931 = vrot.slane %v930, 4
        %v932 = vadd.f32 %v930, %v931
        %v933 = vrot.slane %v932, 2
        %v934 = vadd.f32 %v932, %v933
        %v935 = vrot.slane %v934, 1
        %v936 = vadd.f32 %v934, %v935
        %v937 = vsel %vm586, %v508, 0.0
        %v938 = vrot.slane %v937, 4
        %v939 = vadd.f32 %v937, %v938
        %v940 = vrot.slane %v939, 2
        %v941 = vadd.f32 %v939, %v940
        %v942 = vrot.slane %v941, 1
        %v943 = vadd.f32 %v941, %v942
        %v944 = vsel %vm586, %v509, 0.0
        %v945 = vrot.slane %v944, 4
        %v946 = vadd.f32 %v944, %v945
        %v947 = vrot.slane %v946, 2
        %v948 = vadd.f32 %v946, %v947
        %v949 = vrot.slane %v948, 1
        %v950 = vadd.f32 %v948, %v949
        %v951 = vsel %vm586, %v510, 0.0
        %v952 = vrot.slane %v951, 4
        %v953 = vadd.f32 %v951, %v952
        %v954 = vrot.slane %v953, 2
        %v955 = vadd.f32 %v953, %v954
        %v956 = vrot.slane %v955, 1
        %v957 = vadd.f32 %v955, %v956
        %v958 = vsel %vm586, %v511, 0.0
        %v959 = vrot.slane %v958, 4
        %v960 = vadd.f32 %v958, %v959
        %v961 = vrot.slane %v960, 2
        %v962 = vadd.f32 %v960, %v961
        %v963 = vrot.slane %v962, 1
        %v964 = vadd.f32 %v962, %v963
        %v965 = vsel %vm586, %v512, 0.0
        %v966 = vrot.slane %v965, 4
        %v967 = vadd.f32 %v965, %v966
        %v968 = vrot.slane %v967, 2
        %v969 = vadd.f32 %v967, %v968
        %v970 = vrot.slane %v969, 1
        %v971 = vadd.f32 %v969, %v970
        %v972 = vsel %vm586, %v513, 0.0
        %v973 = vrot.slane %v972, 4
        %v974 = vadd.f32 %v972, %v973
        %v975 = vrot.slane %v974, 2
        %v976 = vadd.f32 %v974, %v975
        %v977 = vrot.slane %v976, 1
        %v978 = vadd.f32 %v976, %v977
        %v979 = vsel %vm586, %v514, 0.0
        %v980 = vrot.slane %v979, 4
        %v981 = vadd.f32 %v979, %v980
        %v982 = vrot.slane %v981, 2
        %v983 = vadd.f32 %v981, %v982
        %v984 = vrot.slane %v983, 1
        %v985 = vadd.f32 %v983, %v984
        %v986 = vsel %vm586, %v515, 0.0
        %v987 = vrot.slane %v986, 4
        %v988 = vadd.f32 %v986, %v987
        %v989 = vrot.slane %v988, 2
        %v990 = vadd.f32 %v988, %v989
        %v991 = vrot.slane %v990, 1
        %v992 = vadd.f32 %v990, %v991
        %v993 = vsel %vm586, %v516, 0.0
        %v994 = vrot.slane %v993, 4
        %v995 = vadd.f32 %v993, %v994
        %v996 = vrot.slane %v995, 2
        %v997 = vadd.f32 %v995, %v996
        %v998 = vrot.slane %v997, 1
        %v999 = vadd.f32 %v997, %v998
        %v1000 = vsel %vm586, %v517, 0.0
        %v1001 = vrot.slane %v1000, 4
        %v1002 = vadd.f32 %v1000, %v1001
        %v1003 = vrot.slane %v1002, 2
        %v1004 = vadd.f32 %v1002, %v1003
        %v1005 = vrot.slane %v1004, 1
        %v1006 = vadd.f32 %v1004, %v1005
        %v1007 = vsel %vm586, %v518, 0.0
        %v1008 = vrot.slane %v1007, 4
        %v1009 = vadd.f32 %v1007, %v1008
        %v1010 = vrot.slane %v1009, 2
        %v1011 = vadd.f32 %v1009, %v1010
        %v1012 = vrot.slane %v1011, 1
        %v1013 = vadd.f32 %v1011, %v1012
        %v1014 = vsel %vm586, %v519, 0.0
        %v1015 = vrot.slane %v1014, 4
        %v1016 = vadd.f32 %v1014, %v1015
        %v1017 = vrot.slane %v1016, 2
        %v1018 = vadd.f32 %v1016, %v1017
        %v1019 = vrot.slane %v1018, 1
        %v1020 = vadd.f32 %v1018, %v1019
        %v1021 = vsel %vm586, %v520, 0.0
        %v1022 = vrot.slane %v1021, 4
        %v1023 = vadd.f32 %v1021, %v1022
        %v1024 = vrot.slane %v1023, 2
        %v1025 = vadd.f32 %v1023, %v1024
        %v1026 = vrot.slane %v1025, 1
        %v1027 = vadd.f32 %v1025, %v1026
        %v1028 = vsel %vm586, %v521, 0.0
        %v1029 = vrot.slane %v1028, 4
        %v1030 = vadd.f32 %v1028, %v1029
        %v1031 = vrot.slane %v1030, 2
        %v1032 = vadd.f32 %v1030, %v1031
        %v1033 = vrot.slane %v1032, 1
        %v1034 = vadd.f32 %v1032, %v1033
        %v1035 = vsel %vm586, %v522, 0.0
        %v1036 = vrot.slane %v1035, 4
        %v1037 = vadd.f32 %v1035, %v1036
        %v1038 = vrot.slane %v1037, 2
        %v1039 = vadd.f32 %v1037, %v1038
        %v1040 = vrot.slane %v1039, 1
        %v1041 = vadd.f32 %v1039, %v1040
        %v1042 = vsel %vm586, %v523, 0.0
        %v1043 = vrot.slane %v1042, 4
        %v1044 = vadd.f32 %v1042, %v1043
        %v1045 = vrot.slane %v1044, 2
        %v1046 = vadd.f32 %v1044, %v1045
        %v1047 = vrot.slane %v1046, 1
        %v1048 = vadd.f32 %v1046, %v1047
        %v1049 = vsel %vm586, %v524, 0.0
        %v1050 = vrot.slane %v1049, 4
        %v1051 = vadd.f32 %v1049, %v1050
        %v1052 = vrot.slane %v1051, 2
        %v1053 = vadd.f32 %v1051, %v1052
        %v1054 = vrot.slane %v1053, 1
        %v1055 = vadd.f32 %v1053, %v1054
        %v1056 = vsel %vm586, %v525, 0.0
        %v1057 = vrot.slane %v1056, 4
        %v1058 = vadd.f32 %v1056, %v1057
        %v1059 = vrot.slane %v1058, 2
        %v1060 = vadd.f32 %v1058, %v1059
        %v1061 = vrot.slane %v1060, 1
        %v1062 = vadd.f32 %v1060, %v1061
        %v1063 = vsel %vm586, %v526, 0.0
        %v1064 = vrot.slane %v1063, 4
        %v1065 = vadd.f32 %v1063, %v1064
        %v1066 = vrot.slane %v1065, 2
        %v1067 = vadd.f32 %v1065, %v1066
        %v1068 = vrot.slane %v1067, 1
        %v1069 = vadd.f32 %v1067, %v1068
        %v1070 = vsel %vm586, %v527, 0.0
        %v1071 = vrot.slane %v1070, 4
        %v1072 = vadd.f32 %v1070, %v1071
        %v1073 = vrot.slane %v1072, 2
        %v1074 = vadd.f32 %v1072, %v1073
        %v1075 = vrot.slane %v1074, 1
        %v1076 = vadd.f32 %v1074, %v1075
        %v1077 = vsel %vm586, %v528, 0.0
        %v1078 = vrot.slane %v1077, 4
        %v1079 = vadd.f32 %v1077, %v1078
        %v1080 = vrot.slane %v1079, 2
        %v1081 = vadd.f32 %v1079, %v1080
        %v1082 = vrot.slane %v1081, 1
        %v1083 = vadd.f32 %v1081, %v1082
        %v1084 = vsel %vm586, %v529, 0.0
        %v1085 = vrot.slane %v1084, 4
        %v1086 = vadd.f32 %v1084, %v1085
        %v1087 = vrot.slane %v1086, 2
        %v1088 = vadd.f32 %v1086, %v1087
        %v1089 = vrot.slane %v1088, 1
        %v1090 = vadd.f32 %v1088, %v1089
        %v1091 = vsel %vm586, %v530, 0.0
        %v1092 = vrot.slane %v1091, 4
        %v1093 = vadd.f32 %v1091, %v1092
        %v1094 = vrot.slane %v1093, 2
        %v1095 = vadd.f32 %v1093, %v1094
        %v1096 = vrot.slane %v1095, 1
        %v1097 = vadd.f32 %v1095, %v1096
        %v1098 = vsel %vm586, %v531, 0.0
        %v1099 = vrot.slane %v1098, 4
        %v1100 = vadd.f32 %v1098, %v1099
        %v1101 = vrot.slane %v1100, 2
        %v1102 = vadd.f32 %v1100, %v1101
        %v1103 = vrot.slane %v1102, 1
        %v1104 = vadd.f32 %v1102, %v1103
        %v1105 = vsel %vm586, %v532, 0.0
        %v1106 = vrot.slane %v1105, 4
        %v1107 = vadd.f32 %v1105, %v1106
        %v1108 = vrot.slane %v1107, 2
        %v1109 = vadd.f32 %v1107, %v1108
        %v1110 = vrot.slane %v1109, 1
        %v1111 = vadd.f32 %v1109, %v1110
        %v1112 = vsel %vm586, %v533, 0.0
        %v1113 = vrot.slane %v1112, 4
        %v1114 = vadd.f32 %v1112, %v1113
        %v1115 = vrot.slane %v1114, 2
        %v1116 = vadd.f32 %v1114, %v1115
        %v1117 = vrot.slane %v1116, 1
        %v1118 = vadd.f32 %v1116, %v1117
        %v1119 = vsel %vm586, %v534, 0.0
        %v1120 = vrot.slane %v1119, 4
        %v1121 = vadd.f32 %v1119, %v1120
        %v1122 = vrot.slane %v1121, 2
        %v1123 = vadd.f32 %v1121, %v1122
        %v1124 = vrot.slane %v1123, 1
        %v1125 = vadd.f32 %v1123, %v1124
        %v1126 = vsel %vm586, %v535, 0.0
        %v1127 = vrot.slane %v1126, 4
        %v1128 = vadd.f32 %v1126, %v1127
        %v1129 = vrot.slane %v1128, 2
        %v1130 = vadd.f32 %v1128, %v1129
        %v1131 = vrot.slane %v1130, 1
        %v1132 = vadd.f32 %v1130, %v1131
        %v1133 = vsel %vm586, %v536, 0.0
        %v1134 = vrot.slane %v1133, 4
        %v1135 = vadd.f32 %v1133, %v1134
        %v1136 = vrot.slane %v1135, 2
        %v1137 = vadd.f32 %v1135, %v1136
        %v1138 = vrot.slane %v1137, 1
        %v1139 = vadd.f32 %v1137, %v1138
        %v1140 = vsel %vm586, %v537, 0.0
        %v1141 = vrot.slane %v1140, 4
        %v1142 = vadd.f32 %v1140, %v1141
        %v1143 = vrot.slane %v1142, 2
        %v1144 = vadd.f32 %v1142, %v1143
        %v1145 = vrot.slane %v1144, 1
        %v1146 = vadd.f32 %v1144, %v1145
        %v1147 = vsel %vm586, %v538, 0.0
        %v1148 = vrot.slane %v1147, 4
        %v1149 = vadd.f32 %v1147, %v1148
        %v1150 = vrot.slane %v1149, 2
        %v1151 = vadd.f32 %v1149, %v1150
        %v1152 = vrot.slane %v1151, 1
        %v1153 = vadd.f32 %v1151, %v1152
        %v1154 = vsel %vm586, %v539, 0.0
        %v1155 = vrot.slane %v1154, 4
        %v1156 = vadd.f32 %v1154, %v1155
        %v1157 = vrot.slane %v1156, 2
        %v1158 = vadd.f32 %v1156, %v1157
        %v1159 = vrot.slane %v1158, 1
        %v1160 = vadd.f32 %v1158, %v1159
        %v1161 = vsel %vm586, %v540, 0.0
        %v1162 = vrot.slane %v1161, 4
        %v1163 = vadd.f32 %v1161, %v1162
        %v1164 = vrot.slane %v1163, 2
        %v1165 = vadd.f32 %v1163, %v1164
        %v1166 = vrot.slane %v1165, 1
        %v1167 = vadd.f32 %v1165, %v1166
        %v1168 = vsel %vm586, %v541, 0.0
        %v1169 = vrot.slane %v1168, 4
        %v1170 = vadd.f32 %v1168, %v1169
        %v1171 = vrot.slane %v1170, 2
        %v1172 = vadd.f32 %v1170, %v1171
        %v1173 = vrot.slane %v1172, 1
        %v1174 = vadd.f32 %v1172, %v1173
        %v1175 = vsel %vm586, %v542, 0.0
        %v1176 = vrot.slane %v1175, 4
        %v1177 = vadd.f32 %v1175, %v1176
        %v1178 = vrot.slane %v1177, 2
        %v1179 = vadd.f32 %v1177, %v1178
        %v1180 = vrot.slane %v1179, 1
        %v1181 = vadd.f32 %v1179, %v1180
        %v1182 = vsel %vm586, %v543, 0.0
        %v1183 = vrot.slane %v1182, 4
        %v1184 = vadd.f32 %v1182, %v1183
        %v1185 = vrot.slane %v1184, 2
        %v1186 = vadd.f32 %v1184, %v1185
        %v1187 = vrot.slane %v1186, 1
        %v1188 = vadd.f32 %v1186, %v1187
        %v1189 = vsel %vm586, %v544, 0.0
        %v1190 = vrot.slane %v1189, 4
        %v1191 = vadd.f32 %v1189, %v1190
        %v1192 = vrot.slane %v1191, 2
        %v1193 = vadd.f32 %v1191, %v1192
        %v1194 = vrot.slane %v1193, 1
        %v1195 = vadd.f32 %v1193, %v1194
        %v1196 = vsel %vm586, %v545, 0.0
        %v1197 = vrot.slane %v1196, 4
        %v1198 = vadd.f32 %v1196, %v1197
        %v1199 = vrot.slane %v1198, 2
        %v1200 = vadd.f32 %v1198, %v1199
        %v1201 = vrot.slane %v1200, 1
        %v1202 = vadd.f32 %v1200, %v1201
        %v1203 = vsel %vm586, %v546, 0.0
        %v1204 = vrot.slane %v1203, 4
        %v1205 = vadd.f32 %v1203, %v1204
        %v1206 = vrot.slane %v1205, 2
        %v1207 = vadd.f32 %v1205, %v1206
        %v1208 = vrot.slane %v1207, 1
        %v1209 = vadd.f32 %v1207, %v1208
        %v1210 = vsel %vm586, %v547, 0.0
        %v1211 = vrot.slane %v1210, 4
        %v1212 = vadd.f32 %v1210, %v1211
        %v1213 = vrot.slane %v1212, 2
        %v1214 = vadd.f32 %v1212, %v1213
        %v1215 = vrot.slane %v1214, 1
        %v1216 = vadd.f32 %v1214, %v1215
        %v1217 = vsel %vm586, %v548, 0.0
        %v1218 = vrot.slane %v1217, 4
        %v1219 = vadd.f32 %v1217, %v1218
        %v1220 = vrot.slane %v1219, 2
        %v1221 = vadd.f32 %v1219, %v1220
        %v1222 = vrot.slane %v1221, 1
        %v1223 = vadd.f32 %v1221, %v1222
        %v1224 = vsel %vm586, %v549, 0.0
        %v1225 = vrot.slane %v1224, 4
        %v1226 = vadd.f32 %v1224, %v1225
        %v1227 = vrot.slane %v1226, 2
        %v1228 = vadd.f32 %v1226, %v1227
        %v1229 = vrot.slane %v1228, 1
        %v1230 = vadd.f32 %v1228, %v1229
        %v1231 = vsel %vm586, %v550, 0.0
        %v1232 = vrot.slane %v1231, 4
        %v1233 = vadd.f32 %v1231, %v1232
        %v1234 = vrot.slane %v1233, 2
        %v1235 = vadd.f32 %v1233, %v1234
        %v1236 = vrot.slane %v1235, 1
        %v1237 = vadd.f32 %v1235, %v1236
        %v1238 = vsel %vm586, %v551, 0.0
        %v1239 = vrot.slane %v1238, 4
        %v1240 = vadd.f32 %v1238, %v1239
        %v1241 = vrot.slane %v1240, 2
        %v1242 = vadd.f32 %v1240, %v1241
        %v1243 = vrot.slane %v1242, 1
        %v1244 = vadd.f32 %v1242, %v1243
        %v1245 = vsel %vm586, %v552, 0.0
        %v1246 = vrot.slane %v1245, 4
        %v1247 = vadd.f32 %v1245, %v1246
        %v1248 = vrot.slane %v1247, 2
        %v1249 = vadd.f32 %v1247, %v1248
        %v1250 = vrot.slane %v1249, 1
        %v1251 = vadd.f32 %v1249, %v1250
        %v1252 = vsel %vm586, %v553, 0.0
        %v1253 = vrot.slane %v1252, 4
        %v1254 = vadd.f32 %v1252, %v1253
        %v1255 = vrot.slane %v1254, 2
        %v1256 = vadd.f32 %v1254, %v1255
        %v1257 = vrot.slane %v1256, 1
        %v1258 = vadd.f32 %v1256, %v1257
        %v1259 = vsel %vm586, %v554, 0.0
        %v1260 = vrot.slane %v1259, 4
        %v1261 = vadd.f32 %v1259, %v1260
        %v1262 = vrot.slane %v1261, 2
        %v1263 = vadd.f32 %v1261, %v1262
        %v1264 = vrot.slane %v1263, 1
        %v1265 = vadd.f32 %v1263, %v1264
        %v1266 = vsel %vm586, %v555, 0.0
        %v1267 = vrot.slane %v1266, 4
        %v1268 = vadd.f32 %v1266, %v1267
        %v1269 = vrot.slane %v1268, 2
        %v1270 = vadd.f32 %v1268, %v1269
        %v1271 = vrot.slane %v1270, 1
        %v1272 = vadd.f32 %v1270, %v1271
        %v1273 = vsel %vm586, %v556, 0.0
        %v1274 = vrot.slane %v1273, 4
        %v1275 = vadd.f32 %v1273, %v1274
        %v1276 = vrot.slane %v1275, 2
        %v1277 = vadd.f32 %v1275, %v1276
        %v1278 = vrot.slane %v1277, 1
        %v1279 = vadd.f32 %v1277, %v1278
        %v1280 = vsel %vm586, %v557, 0.0
        %v1281 = vrot.slane %v1280, 4
        %v1282 = vadd.f32 %v1280, %v1281
        %v1283 = vrot.slane %v1282, 2
        %v1284 = vadd.f32 %v1282, %v1283
        %v1285 = vrot.slane %v1284, 1
        %v1286 = vadd.f32 %v1284, %v1285
        %v1287 = vsel %vm586, %v558, 0.0
        %v1288 = vrot.slane %v1287, 4
        %v1289 = vadd.f32 %v1287, %v1288
        %v1290 = vrot.slane %v1289, 2
        %v1291 = vadd.f32 %v1289, %v1290
        %v1292 = vrot.slane %v1291, 1
        %v1293 = vadd.f32 %v1291, %v1292
        %v1294 = vsel %vm586, %v559, 0.0
        %v1295 = vrot.slane %v1294, 4
        %v1296 = vadd.f32 %v1294, %v1295
        %v1297 = vrot.slane %v1296, 2
        %v1298 = vadd.f32 %v1296, %v1297
        %v1299 = vrot.slane %v1298, 1
        %v1300 = vadd.f32 %v1298, %v1299
        %v1301 = vsel %vm586, %v560, 0.0
        %v1302 = vrot.slane %v1301, 4
        %v1303 = vadd.f32 %v1301, %v1302
        %v1304 = vrot.slane %v1303, 2
        %v1305 = vadd.f32 %v1303, %v1304
        %v1306 = vrot.slane %v1305, 1
        %v1307 = vadd.f32 %v1305, %v1306
        %v1308 = vsel %vm586, %v561, 0.0
        %v1309 = vrot.slane %v1308, 4
        %v1310 = vadd.f32 %v1308, %v1309
        %v1311 = vrot.slane %v1310, 2
        %v1312 = vadd.f32 %v1310, %v1311
        %v1313 = vrot.slane %v1312, 1
        %v1314 = vadd.f32 %v1312, %v1313
        %v1315 = vsel %vm586, %v562, 0.0
        %v1316 = vrot.slane %v1315, 4
        %v1317 = vadd.f32 %v1315, %v1316
        %v1318 = vrot.slane %v1317, 2
        %v1319 = vadd.f32 %v1317, %v1318
        %v1320 = vrot.slane %v1319, 1
        %v1321 = vadd.f32 %v1319, %v1320
        %v1322 = vsel %vm586, %v563, 0.0
        %v1323 = vrot.slane %v1322, 4
        %v1324 = vadd.f32 %v1322, %v1323
        %v1325 = vrot.slane %v1324, 2
        %v1326 = vadd.f32 %v1324, %v1325
        %v1327 = vrot.slane %v1326, 1
        %v1328 = vadd.f32 %v1326, %v1327
        %v1329 = vsel %vm586, %v564, 0.0
        %v1330 = vrot.slane %v1329, 4
        %v1331 = vadd.f32 %v1329, %v1330
        %v1332 = vrot.slane %v1331, 2
        %v1333 = vadd.f32 %v1331, %v1332
        %v1334 = vrot.slane %v1333, 1
        %v1335 = vadd.f32 %v1333, %v1334
        %v1336 = vsel %vm586, %v565, 0.0
        %v1337 = vrot.slane %v1336, 4
        %v1338 = vadd.f32 %v1336, %v1337
        %v1339 = vrot.slane %v1338, 2
        %v1340 = vadd.f32 %v1338, %v1339
        %v1341 = vrot.slane %v1340, 1
        %v1342 = vadd.f32 %v1340, %v1341
        %v1343 = vsel %vm586, %v566, 0.0
        %v1344 = vrot.slane %v1343, 4
        %v1345 = vadd.f32 %v1343, %v1344
        %v1346 = vrot.slane %v1345, 2
        %v1347 = vadd.f32 %v1345, %v1346
        %v1348 = vrot.slane %v1347, 1
        %v1349 = vadd.f32 %v1347, %v1348
        %v1350 = vsel %vm586, %v567, 0.0
        %v1351 = vrot.slane %v1350, 4
        %v1352 = vadd.f32 %v1350, %v1351
        %v1353 = vrot.slane %v1352, 2
        %v1354 = vadd.f32 %v1352, %v1353
        %v1355 = vrot.slane %v1354, 1
        %v1356 = vadd.f32 %v1354, %v1355
        %v1357 = vsel %vm586, %v568, 0.0
        %v1358 = vrot.slane %v1357, 4
        %v1359 = vadd.f32 %v1357, %v1358
        %v1360 = vrot.slane %v1359, 2
        %v1361 = vadd.f32 %v1359, %v1360
        %v1362 = vrot.slane %v1361, 1
        %v1363 = vadd.f32 %v1361, %v1362
        %v1364 = vsel %vm586, %v569, 0.0
        %v1365 = vrot.slane %v1364, 4
        %v1366 = vadd.f32 %v1364, %v1365
        %v1367 = vrot.slane %v1366, 2
        %v1368 = vadd.f32 %v1366, %v1367
        %v1369 = vrot.slane %v1368, 1
        %v1370 = vadd.f32 %v1368, %v1369
        %v1371 = vsel %vm586, %v570, 0.0
        %v1372 = vrot.slane %v1371, 4
        %v1373 = vadd.f32 %v1371, %v1372
        %v1374 = vrot.slane %v1373, 2
        %v1375 = vadd.f32 %v1373, %v1374
        %v1376 = vrot.slane %v1375, 1
        %v1377 = vadd.f32 %v1375, %v1376
        %v1378 = vsel %vm586, %v571, 0.0
        %v1379 = vrot.slane %v1378, 4
        %v1380 = vadd.f32 %v1378, %v1379
        %v1381 = vrot.slane %v1380, 2
        %v1382 = vadd.f32 %v1380, %v1381
        %v1383 = vrot.slane %v1382, 1
        %v1384 = vadd.f32 %v1382, %v1383
        %v1385 = vsel %vm586, %v572, 0.0
        %v1386 = vrot.slane %v1385, 4
        %v1387 = vadd.f32 %v1385, %v1386
        %v1388 = vrot.slane %v1387, 2
        %v1389 = vadd.f32 %v1387, %v1388
        %v1390 = vrot.slane %v1389, 1
        %v1391 = vadd.f32 %v1389, %v1390
        %v1392 = vsel %vm586, %v573, 0.0
        %v1393 = vrot.slane %v1392, 4
        %v1394 = vadd.f32 %v1392, %v1393
        %v1395 = vrot.slane %v1394, 2
        %v1396 = vadd.f32 %v1394, %v1395
        %v1397 = vrot.slane %v1396, 1
        %v1398 = vadd.f32 %v1396, %v1397
        %v1399 = vsel %vm586, %v574, 0.0
        %v1400 = vrot.slane %v1399, 4
        %v1401 = vadd.f32 %v1399, %v1400
        %v1402 = vrot.slane %v1401, 2
        %v1403 = vadd.f32 %v1401, %v1402
        %v1404 = vrot.slane %v1403, 1
        %v1405 = vadd.f32 %v1403, %v1404
        %v1406 = vsel %vm586, %v575, 0.0
        %v1407 = vrot.slane %v1406, 4
        %v1408 = vadd.f32 %v1406, %v1407
        %v1409 = vrot.slane %v1408, 2
        %v1410 = vadd.f32 %v1408, %v1409
        %v1411 = vrot.slane %v1410, 1
        %v1412 = vadd.f32 %v1410, %v1411
        %v1413 = vsel %vm586, %v576, 0.0
        %v1414 = vrot.slane %v1413, 4
        %v1415 = vadd.f32 %v1413, %v1414
        %v1416 = vrot.slane %v1415, 2
        %v1417 = vadd.f32 %v1415, %v1416
        %v1418 = vrot.slane %v1417, 1
        %v1419 = vadd.f32 %v1417, %v1418
        %v1420 = vsel %vm586, %v577, 0.0
        %v1421 = vrot.slane %v1420, 4
        %v1422 = vadd.f32 %v1420, %v1421
        %v1423 = vrot.slane %v1422, 2
        %v1424 = vadd.f32 %v1422, %v1423
        %v1425 = vrot.slane %v1424, 1
        %v1426 = vadd.f32 %v1424, %v1425
        %v1427 = vsel %vm586, %v578, 0.0
        %v1428 = vrot.slane %v1427, 4
        %v1429 = vadd.f32 %v1427, %v1428
        %v1430 = vrot.slane %v1429, 2
        %v1431 = vadd.f32 %v1429, %v1430
        %v1432 = vrot.slane %v1431, 1
        %v1433 = vadd.f32 %v1431, %v1432
        %v1434 = vsel %vm586, %v579, 0.0
        %v1435 = vrot.slane %v1434, 4
        %v1436 = vadd.f32 %v1434, %v1435
        %v1437 = vrot.slane %v1436, 2
        %v1438 = vadd.f32 %v1436, %v1437
        %v1439 = vrot.slane %v1438, 1
        %v1440 = vadd.f32 %v1438, %v1439
        %v1441 = vsel %vm586, %v580, 0.0
        %v1442 = vrot.slane %v1441, 4
        %v1443 = vadd.f32 %v1441, %v1442
        %v1444 = vrot.slane %v1443, 2
        %v1445 = vadd.f32 %v1443, %v1444
        %v1446 = vrot.slane %v1445, 1
        %v1447 = vadd.f32 %v1445, %v1446
        %v1448 = vsel %vm586, %v581, 0.0
        %v1449 = vrot.slane %v1448, 4
        %v1450 = vadd.f32 %v1448, %v1449
        %v1451 = vrot.slane %v1450, 2
        %v1452 = vadd.f32 %v1450, %v1451
        %v1453 = vrot.slane %v1452, 1
        %v1454 = vadd.f32 %v1452, %v1453
        %v1455 = vsel %vm586, %v582, 0.0
        %v1456 = vrot.slane %v1455, 4
        %v1457 = vadd.f32 %v1455, %v1456
        %v1458 = vrot.slane %v1457, 2
        %v1459 = vadd.f32 %v1457, %v1458
        %v1460 = vrot.slane %v1459, 1
        %v1461 = vadd.f32 %v1459, %v1460
        %v1462 = vsel %vm586, %v583, 0.0
        %v1463 = vrot.slane %v1462, 4
        %v1464 = vadd.f32 %v1462, %v1463
        %v1465 = vrot.slane %v1464, 2
        %v1466 = vadd.f32 %v1464, %v1465
        %v1467 = vrot.slane %v1466, 1
        %v1468 = vadd.f32 %v1466, %v1467
        %v1469 = vsel %vm586, %v584, 0.0
        %v1470 = vrot.slane %v1469, 4
        %v1471 = vadd.f32 %v1469, %v1470
        %v1472 = vrot.slane %v1471, 2
        %v1473 = vadd.f32 %v1471, %v1472
        %v1474 = vrot.slane %v1473, 1
        %v1475 = vadd.f32 %v1473, %v1474
        %v1476 = vsel %vm586, %v585, 0.0
        %v1477 = vrot.slane %v1476, 4
        %v1478 = vadd.f32 %v1476, %v1477
        %v1479 = vrot.slane %v1478, 2
        %v1480 = vadd.f32 %v1478, %v1479
        %v1481 = vrot.slane %v1480, 1
        %v1482 = vadd.f32 %v1480, %v1481
        %v1483 = vld [vmem:[%s3] sm:$0xff]
        %v1484 = vld [vmem:[%s3 + $0x8] sm:$0xff]
        %v1485 = vld [vmem:[%s3 + $0x10] sm:$0xff]
        %v1486 = vld [vmem:[%s3 + $0x18] sm:$0xff]
        %vm1615 = vcmask 1041409
        %v1616 = vsel %vm1615, %v600, %v593
        %vm1617 = vcmask 1042434
        %v1618 = vsel %vm1617, %v607, %v1616
        %vm1619 = vcmask 1043459
        %v1620 = vsel %vm1619, %v614, %v1618
        %vm1621 = vcmask 1044484
        %v1622 = vsel %vm1621, %v621, %v1620
        %vm1623 = vcmask 1045509
        %v1624 = vsel %vm1623, %v628, %v1622
        %vm1625 = vcmask 1046534
        %v1626 = vsel %vm1625, %v635, %v1624
        %vm1627 = vcmask 1047559
        %v1628 = vsel %vm1627, %v642, %v1626
        %v1629 = vsel %vm1615, %v656, %v649
        %v1630 = vsel %vm1617, %v663, %v1629
        %v1631 = vsel %vm1619, %v670, %v1630
        %v1632 = vsel %vm1621, %v677, %v1631
        %v1633 = vsel %vm1623, %v684, %v1632
        %v1634 = vsel %vm1625, %v691, %v1633
        %v1635 = vsel %vm1627, %v698, %v1634
        %v1636 = vsel %vm1615, %v712, %v705
        %v1637 = vsel %vm1617, %v719, %v1636
        %v1638 = vsel %vm1619, %v726, %v1637
        %v1639 = vsel %vm1621, %v733, %v1638
        %v1640 = vsel %vm1623, %v740, %v1639
        %v1641 = vsel %vm1625, %v747, %v1640
        %v1642 = vsel %vm1627, %v754, %v1641
        %v1643 = vsel %vm1615, %v768, %v761
        %v1644 = vsel %vm1617, %v775, %v1643
        %v1645 = vsel %vm1619, %v782, %v1644
        %v1646 = vsel %vm1621, %v789, %v1645
        %v1647 = vsel %vm1623, %v796, %v1646
        %v1648 = vsel %vm1625, %v803, %v1647
        %v1649 = vsel %vm1627, %v810, %v1648
        %v1650 = vsel %vm1615, %v824, %v817
        %v1651 = vsel %vm1617, %v831, %v1650
        %v1652 = vsel %vm1619, %v838, %v1651
        %v1653 = vsel %vm1621, %v845, %v1652
        %v1654 = vsel %vm1623, %v852, %v1653
        %v1655 = vsel %vm1625, %v859, %v1654
        %v1656 = vsel %vm1627, %v866, %v1655
        %v1657 = vsel %vm1615, %v880, %v873
        %v1658 = vsel %vm1617, %v887, %v1657
        %v1659 = vsel %vm1619, %v894, %v1658
        %v1660 = vsel %vm1621, %v901, %v1659
        %v1661 = vsel %vm1623, %v908, %v1660
        %v1662 = vsel %vm1625, %v915, %v1661
        %v1663 = vsel %vm1627, %v922, %v1662
        %v1664 = vsel %vm1615, %v936, %v929
        %v1665 = vsel %vm1617, %v943, %v1664
        %v1666 = vsel %vm1619, %v950, %v1665
        %v1667 = vsel %vm1621, %v957, %v1666
        %v1668 = vsel %vm1623, %v964, %v1667
        %v1669 = vsel %vm1625, %v971, %v1668
        %v1670 = vsel %vm1627, %v978, %v1669
        %v1671 = vsel %vm1615, %v992, %v985
        %v1672 = vsel %vm1617, %v999, %v1671
        %v1673 = vsel %vm1619, %v1006, %v1672
        %v1674 = vsel %vm1621, %v1013, %v1673
        %v1675 = vsel %vm1623, %v1020, %v1674
        %v1676 = vsel %vm1625, %v1027, %v1675
        %v1677 = vsel %vm1627, %v1034, %v1676
        %v1678 = vsel %vm1615, %v1048, %v1041
        %v1679 = vsel %vm1617, %v1055, %v1678
        %v1680 = vsel %vm1619, %v1062, %v1679
        %v1681 = vsel %vm1621, %v1069, %v1680
        %v1682 = vsel %vm1623, %v1076, %v1681
        %v1683 = vsel %vm1625, %v1083, %v1682
        %v1684 = vsel %vm1627, %v1090, %v1683
        %v1685 = vsel %vm1615, %v1104, %v1097
        %v1686 = vsel %vm1617, %v1111, %v1685
        %v1687 = vsel %vm1619, %v1118, %v1686
        %v1688 = vsel %vm1621, %v1125, %v1687
        %v1689 = vsel %vm1623, %v1132, %v1688
        %v1690 = vsel %vm1625, %v1139, %v1689
        %v1691 = vsel %vm1627, %v1146, %v1690
        %v1692 = vsel %vm1615, %v1160, %v1153
        %v1693 = vsel %vm1617, %v1167, %v1692
        %v1694 = vsel %vm1619, %v1174, %v1693
        %v1695 = vsel %vm1621, %v1181, %v1694
        %v1696 = vsel %vm1623, %v1188, %v1695
        %v1697 = vsel %vm1625, %v1195, %v1696
        %v1698 = vsel %vm1627, %v1202, %v1697
        %v1699 = vsel %vm1615, %v1216, %v1209
        %v1700 = vsel %vm1617, %v1223, %v1699
        %v1701 = vsel %vm1619, %v1230, %v1700
        %v1702 = vsel %vm1621, %v1237, %v1701
        %v1703 = vsel %vm1623, %v1244, %v1702
        %v1704 = vsel %vm1625, %v1251, %v1703
        %v1705 = vsel %vm1627, %v1258, %v1704
        %v1706 = vsel %vm1615, %v1272, %v1265
        %v1707 = vsel %vm1617, %v1279, %v1706
        %v1708 = vsel %vm1619, %v1286, %v1707
        %v1709 = vsel %vm1621, %v1293, %v1708
        %v1710 = vsel %vm1623, %v1300, %v1709
        %v1711 = vsel %vm1625, %v1307, %v1710
        %v1712 = vsel %vm1627, %v1314, %v1711
        %v1713 = vsel %vm1615, %v1328, %v1321
        %v1714 = vsel %vm1617, %v1335, %v1713
        %v1715 = vsel %vm1619, %v1342, %v1714
        %v1716 = vsel %vm1621, %v1349, %v1715
        %v1717 = vsel %vm1623, %v1356, %v1716
        %v1718 = vsel %vm1625, %v1363, %v1717
        %v1719 = vsel %vm1627, %v1370, %v1718
        %v1720 = vsel %vm1615, %v1384, %v1377
        %v1721 = vsel %vm1617, %v1391, %v1720
        %v1722 = vsel %vm1619, %v1398, %v1721
        %v1723 = vsel %vm1621, %v1405, %v1722
        %v1724 = vsel %vm1623, %v1412, %v1723
        %v1725 = vsel %vm1625, %v1419, %v1724
        %v1726 = vsel %vm1627, %v1426, %v1725
        %v1727 = vsel %vm1615, %v1440, %v1433
        %v1728 = vsel %vm1617, %v1447, %v1727
        %v1729 = vsel %vm1619, %v1454, %v1728
        %v1730 = vsel %vm1621, %v1461, %v1729
        %v1731 = vsel %vm1623, %v1468, %v1730
        %v1732 = vsel %vm1625, %v1475, %v1731
        %v1733 = vsel %vm1627, %v1482, %v1732
        %vm1734 = vcmask 261120
        %v1735 = vsel %vm1734, %v1628, 0
        %v1737 = vsel %vm1734, %v1635, 0
        %v1739 = vsel %vm1734, %v1642, 0
        %v1741 = vsel %vm1734, %v1649, 0
        %v1743 = vsel %vm1734, %v1656, 0
        %v1745 = vsel %vm1734, %v1663, 0
        %v1747 = vsel %vm1734, %v1670, 0
        %v1749 = vsel %vm1734, %v1677, 0
        %v1751 = vsel %vm1734, %v1684, 0
        %v1753 = vsel %vm1734, %v1691, 0
        %v1755 = vsel %vm1734, %v1698, 0
        %v1757 = vsel %vm1734, %v1705, 0
        %v1759 = vsel %vm1734, %v1712, 0
        %v1761 = vsel %vm1734, %v1719, 0
        %v1763 = vsel %vm1734, %v1726, 0
        %v1765 = vsel %vm1734, %v1733, 0
        %1767 = vmatpush.msra.mxu0 0.0
        %1768 = vmatpush.msra.mxu0 0.0
        %1769 = vmatpush.msra.mxu0 0.0
        %1770 = vmatpush.msra.mxu0 0.0
        %1771 = vmatpush.msra.mxu0 0.0
        %1772 = vmatpush.msra.mxu0 0.0
        %1773 = vmatpush.msra.mxu0 0.0
        %1774 = vmatpush.msra.mxu0 0.0
        %1775 = vmatpush.msra.mxu0 0.0
        %1776 = vmatpush.msra.mxu0 0.0
        %1777 = vmatpush.msra.mxu0 0.0
        %1778 = vmatpush.msra.mxu0 0.0
        %1779 = vmatpush.msra.mxu0 %v1486
        %1780 = vmatpush.msra.mxu0 %v1485
        %1781 = vmatpush.msra.mxu0 %v1484
        %1782 = vmatpush.msra.mxu0 %v1483
        %1783 = vmatmul.f32.gmra.mxu0 %v1735
        %v1784 = vpop.f32.mrf.mxu0
        %v1785 = vadd.f32 0.0, %v1784
        %1786 = vmatmul.f32.gmra.mxu0 %v1737
        %v1787 = vpop.f32.mrf.mxu0
        %v1788 = vadd.f32 0.0, %v1787
        %1789 = vmatmul.f32.gmra.mxu0 %v1739
        %v1790 = vpop.f32.mrf.mxu0
        %v1791 = vadd.f32 0.0, %v1790
        %1792 = vmatmul.f32.gmra.mxu0 %v1741
        %v1793 = vpop.f32.mrf.mxu0
        %v1794 = vadd.f32 0.0, %v1793
        %1795 = vmatmul.f32.gmra.mxu0 %v1743
        %v1796 = vpop.f32.mrf.mxu0
        %v1797 = vadd.f32 0.0, %v1796
        %1798 = vmatmul.f32.gmra.mxu0 %v1745
        %v1799 = vpop.f32.mrf.mxu0
        %v1800 = vadd.f32 0.0, %v1799
        %1801 = vmatmul.f32.gmra.mxu0 %v1747
        %v1802 = vpop.f32.mrf.mxu0
        %v1803 = vadd.f32 0.0, %v1802
        %1804 = vmatmul.f32.gmra.mxu0 %v1749
        %v1805 = vpop.f32.mrf.mxu0
        %v1806 = vadd.f32 0.0, %v1805
        %1807 = vmatmul.f32.gmra.mxu0 %v1751
        %v1808 = vpop.f32.mrf.mxu0
        %v1809 = vadd.f32 0.0, %v1808
        %1810 = vmatmul.f32.gmra.mxu0 %v1753
        %v1811 = vpop.f32.mrf.mxu0
        %v1812 = vadd.f32 0.0, %v1811
        %1813 = vmatmul.f32.gmra.mxu0 %v1755
        %v1814 = vpop.f32.mrf.mxu0
        %v1815 = vadd.f32 0.0, %v1814
        %1816 = vmatmul.f32.gmra.mxu0 %v1757
        %v1817 = vpop.f32.mrf.mxu0
        %v1818 = vadd.f32 0.0, %v1817
        %1819 = vmatmul.f32.gmra.mxu0 %v1759
        %v1820 = vpop.f32.mrf.mxu0
        %v1821 = vadd.f32 0.0, %v1820
        %1822 = vmatmul.f32.gmra.mxu0 %v1761
        %v1823 = vpop.f32.mrf.mxu0
        %v1824 = vadd.f32 0.0, %v1823
        %1825 = vmatmul.f32.gmra.mxu0 %v1763
        %v1826 = vpop.f32.mrf.mxu0
        %v1827 = vadd.f32 0.0, %v1826
        %1828 = vmatmul.f32.gmra.mxu0 %v1765
        %v1829 = vpop.f32.mrf.mxu0
        %v1830 = vadd.f32 0.0, %v1829
        %1831 = vdwg.mxu0
        %v1832 = vld [vmem:[%s299] sm:$0x1]
        %v1833 = vld [vmem:[%s299 + $0x1] sm:$0x1]
        %v1834 = vld [vmem:[%s299 + $0x2] sm:$0x1]
        %v1835 = vld [vmem:[%s299 + $0x3] sm:$0x1]
        %v1836 = vld [vmem:[%s299 + $0x4] sm:$0x1]
        %v1837 = vld [vmem:[%s299 + $0x5] sm:$0x1]
        %v1838 = vld [vmem:[%s299 + $0x6] sm:$0x1]
        %v1839 = vld [vmem:[%s299 + $0x7] sm:$0x1]
        %v1840 = vld [vmem:[%s299 + $0x8] sm:$0x1]
        %v1841 = vld [vmem:[%s299 + $0x9] sm:$0x1]
        %v1842 = vld [vmem:[%s299 + $0xa] sm:$0x1]
        %v1843 = vld [vmem:[%s299 + $0xb] sm:$0x1]
        %v1844 = vld [vmem:[%s299 + $0xc] sm:$0x1]
        %v1845 = vld [vmem:[%s299 + $0xd] sm:$0x1]
        %v1846 = vld [vmem:[%s299 + $0xe] sm:$0x1]
        %v1847 = vld [vmem:[%s299 + $0xf] sm:$0x1]
        %v1864 = vperm.slane %v1832, 0
        %v1865 = vperm.slane %v1833, 0
        %v1866 = vperm.slane %v1834, 0
        %v1867 = vperm.slane %v1835, 0
        %v1868 = vperm.slane %v1836, 0
        %v1869 = vperm.slane %v1837, 0
        %v1870 = vperm.slane %v1838, 0
        %v1871 = vperm.slane %v1839, 0
        %v1872 = vperm.slane %v1840, 0
        %v1873 = vperm.slane %v1841, 0
        %v1874 = vperm.slane %v1842, 0
        %v1875 = vperm.slane %v1843, 0
        %v1876 = vperm.slane %v1844, 0
        %v1877 = vperm.slane %v1845, 0
        %v1878 = vperm.slane %v1846, 0
        %v1879 = vperm.slane %v1847, 0
        %1880 = vset.pattern.permute.xlu0 0
        %1881 = vperm.xlu0 %1880, %v1864
        %v1882 = vpop.permute.xlu0 %1881
        %1884 = vset.pattern.permute.xlu0 0
        %1885 = vperm.xlu0 %1884, %v1865
        %v1886 = vpop.permute.xlu0 %1885
        %1888 = vset.pattern.permute.xlu0 0
        %1889 = vperm.xlu0 %1888, %v1866
        %v1890 = vpop.permute.xlu0 %1889
        %1892 = vset.pattern.permute.xlu0 0
        %1893 = vperm.xlu0 %1892, %v1867
        %v1894 = vpop.permute.xlu0 %1893
        %1896 = vset.pattern.permute.xlu0 0
        %1897 = vperm.xlu0 %1896, %v1868
        %v1898 = vpop.permute.xlu0 %1897
        %1900 = vset.pattern.permute.xlu0 0
        %1901 = vperm.xlu0 %1900, %v1869
        %v1902 = vpop.permute.xlu0 %1901
        %1904 = vset.pattern.permute.xlu0 0
        %1905 = vperm.xlu0 %1904, %v1870
        %v1906 = vpop.permute.xlu0 %1905
        %1908 = vset.pattern.permute.xlu0 0
        %1909 = vperm.xlu0 %1908, %v1871
        %v1910 = vpop.permute.xlu0 %1909
        %1912 = vset.pattern.permute.xlu0 0
        %1913 = vperm.xlu0 %1912, %v1872
        %v1914 = vpop.permute.xlu0 %1913
        %1916 = vset.pattern.permute.xlu0 0
        %1917 = vperm.xlu0 %1916, %v1873
        %v1918 = vpop.permute.xlu0 %1917
        %1920 = vset.pattern.permute.xlu0 0
        %1921 = vperm.xlu0 %1920, %v1874
        %v1922 = vpop.permute.xlu0 %1921
        %1924 = vset.pattern.permute.xlu0 0
        %1925 = vperm.xlu0 %1924, %v1875
        %v1926 = vpop.permute.xlu0 %1925
        %1928 = vset.pattern.permute.xlu0 0
        %1929 = vperm.xlu0 %1928, %v1876
        %v1930 = vpop.permute.xlu0 %1929
        %1932 = vset.pattern.permute.xlu0 0
        %1933 = vperm.xlu0 %1932, %v1877
        %v1934 = vpop.permute.xlu0 %1933
        %1936 = vset.pattern.permute.xlu0 0
        %1937 = vperm.xlu0 %1936, %v1878
        %v1938 = vpop.permute.xlu0 %1937
        %1940 = vset.pattern.permute.xlu0 0
        %1941 = vperm.xlu0 %1940, %v1879
        %v1942 = vpop.permute.xlu0 %1941
        %v1944 = vadd.f32 %v1785, %v1882
        %v1945 = vadd.f32 %v1788, %v1886
        %v1946 = vadd.f32 %v1791, %v1890
        %v1947 = vadd.f32 %v1794, %v1894
        %v1948 = vadd.f32 %v1797, %v1898
        %v1949 = vadd.f32 %v1800, %v1902
        %v1950 = vadd.f32 %v1803, %v1906
        %v1951 = vadd.f32 %v1806, %v1910
        %v1952 = vadd.f32 %v1809, %v1914
        %v1953 = vadd.f32 %v1812, %v1918
        %v1954 = vadd.f32 %v1815, %v1922
        %v1955 = vadd.f32 %v1818, %v1926
        %v1956 = vadd.f32 %v1821, %v1930
        %v1957 = vadd.f32 %v1824, %v1934
        %v1958 = vadd.f32 %v1827, %v1938
        %v1959 = vadd.f32 %v1830, %v1942
        %v1960 = vmax.f32 %v1944, 0.0
        %v1961 = vmax.f32 %v1945, 0.0
        %v1962 = vmax.f32 %v1946, 0.0
        %v1963 = vmax.f32 %v1947, 0.0
        %v1964 = vmax.f32 %v1948, 0.0
        %v1965 = vmax.f32 %v1949, 0.0
        %v1966 = vmax.f32 %v1950, 0.0
        %v1967 = vmax.f32 %v1951, 0.0
        %v1968 = vmax.f32 %v1952, 0.0
        %v1969 = vmax.f32 %v1953, 0.0
        %v1970 = vmax.f32 %v1954, 0.0
        %v1971 = vmax.f32 %v1955, 0.0
        %v1972 = vmax.f32 %v1956, 0.0
        %v1973 = vmax.f32 %v1957, 0.0
        %v1974 = vmax.f32 %v1958, 0.0
        %v1975 = vmax.f32 %v1959, 0.0
        %v1976 = vmin.f32 %v1960, 6.0
        %v1977 = vmin.f32 %v1961, 6.0
        %v1978 = vmin.f32 %v1962, 6.0
        %v1979 = vmin.f32 %v1963, 6.0
        %v1980 = vmin.f32 %v1964, 6.0
        %v1981 = vmin.f32 %v1965, 6.0
        %v1982 = vmin.f32 %v1966, 6.0
        %v1983 = vmin.f32 %v1967, 6.0
        %v1984 = vmin.f32 %v1968, 6.0
        %v1985 = vmin.f32 %v1969, 6.0
        %v1986 = vmin.f32 %v1970, 6.0
        %v1987 = vmin.f32 %v1971, 6.0
        %v1988 = vmin.f32 %v1972, 6.0
        %v1989 = vmin.f32 %v1973, 6.0
        %v1990 = vmin.f32 %v1974, 6.0
        %v1991 = vmin.f32 %v1975, 6.0
        %vm1992 = vcmask 64512
        %1993 = vst.msk [vmem:[%s312] sm:$0xff] %vm1992, %v1976
        %1994 = vst.msk [vmem:[%s312 + $0x8] sm:$0xff] %vm1992, %v1977
        %1995 = vst.msk [vmem:[%s312 + $0x10] sm:$0xff] %vm1992, %v1978
        %1996 = vst.msk [vmem:[%s312 + $0x18] sm:$0xff] %vm1992, %v1979
        %1997 = vst.msk [vmem:[%s312 + $0x20] sm:$0xff] %vm1992, %v1980
        %1998 = vst.msk [vmem:[%s312 + $0x28] sm:$0xff] %vm1992, %v1981
        %1999 = vst.msk [vmem:[%s312 + $0x30] sm:$0xff] %vm1992, %v1982
        %2000 = vst.msk [vmem:[%s312 + $0x38] sm:$0xff] %vm1992, %v1983
        %2001 = vst.msk [vmem:[%s312 + $0x40] sm:$0xff] %vm1992, %v1984
        %2002 = vst.msk [vmem:[%s312 + $0x48] sm:$0xff] %vm1992, %v1985
        %2003 = vst.msk [vmem:[%s312 + $0x50] sm:$0xff] %vm1992, %v1986
        %2004 = vst.msk [vmem:[%s312 + $0x58] sm:$0xff] %vm1992, %v1987
        %2005 = vst.msk [vmem:[%s312 + $0x60] sm:$0xff] %vm1992, %v1988
        %2006 = vst.msk [vmem:[%s312 + $0x68] sm:$0xff] %vm1992, %v1989
        %2007 = vst.msk [vmem:[%s312 + $0x70] sm:$0xff] %vm1992, %v1990
        %2008 = vst.msk [vmem:[%s312 + $0x78] sm:$0xff] %vm1992, %v1991
        %s2009 = smul.u32 16, %s24
        %p2010 = scmp.lt.s32.totalorder %s25, 1
        %s2011 = scalar_select %p2010, %s25, 1
        %p2012 = scmp.lt.s32.totalorder %s2009, 15
        %s2013 = scalar_select %p2012, %s2009, 15
        %p2014 = scmp.lt.s32.totalorder %s26, 0
        %s2015 = scalar_select %p2014, %s26, 0
        %s2016 = sadd.s32 %s2015, %s2013
        %s2017 = smul.addr %s2011, 16
        %s2018 = sadd.s32 %s2016, %s2017
        %s2019 = smul.addr %s2018, 8
        %s2020 = scalar_lea.vmem %s4, %s2019
        // Predicated region
        $region45: #{tpu_custom_call.1} parent=35 // pred_check
          %p2021 = pneg %p163
        $region46: #{tpu_custom_call.1} parent=35 // pred_check_branch
          %2023 = sbr.rel (%p2021) target = $region48
        $region47: #{tpu_custom_call.1} parent=35 // pred_region
          %s2024 = smul.u32 16, %s24
        $region48: #{tpu_custom_call.1} parent=35 // pred_fallthru
          _
      $region36: #{tpu_custom_call.1} parent=5 // pred_fallthru
        _
      %p2025 = scmp.le.s32.totalorder 2, %s14
      // Predicated region
      $region49: #{tpu_custom_call.1} parent=5 // pred_check
        %p2026 = pneg %p2025
      $region50: #{tpu_custom_call.1} parent=5 // pred_check_branch
        %2028 = sbr.rel (%p2026) target = $region52
      $region51: #{tpu_custom_call.1} parent=5 // pred_region
        %s2029 = ssub.s32 %s14, 2
        // Predicated region
        $region53: #{tpu_custom_call.1} parent=51 // pred_check
          %p2030 = pneg %p169
        $region54: #{tpu_custom_call.1} parent=51 // pred_check_branch
          %2032 = sbr.rel (%p2030) target = $region56
        $region55: #{tpu_custom_call.1} parent=51 // pred_region
          %s2033 = smul.u32 16, %s27
          %p2034 = scmp.lt.s32.totalorder %s28, 1
          %s2035 = scalar_select %p2034, %s28, 1
          %p2036 = scmp.lt.s32.totalorder %s2033, 15
          %s2037 = scalar_select %p2036, %s2033, 15
          %p2038 = scmp.lt.s32.totalorder %s29, 0
          %s2039 = scalar_select %p2038, %s29, 0
          %s2040 = sadd.s32 %s2039, %s2037
          %s2041 = smul.addr %s2035, 16
          %s2042 = sadd.s32 %s2040, %s2041
          %s2043 = smul.addr %s2042, 8
          %s2044 = scalar_lea.vmem %s4, %s2043
        $region56: #{tpu_custom_call.1} parent=51 // pred_fallthru
          _
      $region52: #{tpu_custom_call.1} parent=5 // pred_fallthru
        _
    $region6: #{tpu_custom_call.1} parent=1 // loop_footer
      %s18 = sadd.s32 1, %s14
    $region7: #{tpu_custom_call.1} parent=1 // loop_footer_branch
      %13 = sbr.rel target = $region3
    $region8: #{tpu_custom_call.1} parent=1 // loop_exit
      _
    %2045 = vsyncpa [#allocation3], 1
    %s2046 = scalar_lea.sflag [#allocation3], 1
    %2047 = vsyncpa %s2046, 1
    %2048 = vsyncpa [#allocation5], 1

</llo_original>
